<compile_context>
chip_gen: v7x
topology: tpu7x:2x2x1
jax: 0.10.0
libtpu: 0.0.40
codegen_flags: <defaults>
</compile_context>

<pallas_src>
import jax
import jax.numpy as jnp
from jax.experimental import pallas as pl
from jax.experimental.pallas import tpu as pltpu

BN_EPS = 1e-5
LANE = 128                 # pad every channel dim to the lane width
NEG_INF = -1e30            # masks padded class logits in log_softmax


def _pad2(a, rows, cols):
    out = jnp.zeros((rows, cols), a.dtype)
    return out.at[: a.shape[0], : a.shape[1]].set(a)


def _vmem_limit_bytes():
    """Generation-aware scoped-VMEM cap: half of physical, clamped to [32, 96] MiB."""
    default = 32 * 1024 * 1024
    try:
        cap = int(pltpu.get_tpu_info().vmem_capacity_bytes)
    except Exception:
        return default
    return int(min(max(cap // 2, default), 96 * 1024 * 1024))


# ----------------------------------------------------------------------------
# Fully fused forward:
#   grid = (num_layers,)  ["arbitrary": layer carry lives in the x VMEM scratch]
#   step l:  x <- relu( W2f_l( relu( W1f_l( (1+eps_l)*x + A_l @ x ) + b1f_l ) ) + b2f_l )
#   step L-1 finalize (first n_dst rows only):
#            y = relu( Wl1f x + bl1f );  logits = Wl2 y + bl2;  out = log_softmax(logits)
#   (all BatchNorms folded into W*/b* in eval mode; dropout(eval) = identity)
# ----------------------------------------------------------------------------
def fused_gin_kernel(eps_ref,                       # SMEM (L,) f32
                     x_ref,                         # (N, C) bf16, resident input features
                     adj_ref,                       # (N, N) bf16, per-layer adjacency
                     w1_ref, b1_ref, w2_ref, b2_ref,  # per-layer MLP (BNs folded)
                     wl1_ref, bl1_ref, wl2_ref, bl2_ref,  # head (BN folded), resident
                     out_ref,                       # (n_dst, C) f32 log-probs
                     x_scr):                        # VMEM (N, C) bf16 — resident x
    l = pl.program_id(0)

    @pl.when(l == 0)
    def _():
        x_scr[...] = x_ref[...]

    x = x_scr[...]
    # aggregation: (1 + eps) * x  +  A @ x   (dense form of scatter-add), f32 accumulate
    agg = (1.0 + eps_ref[l]) * x.astype(jnp.float32)
    agg = agg + jnp.dot(adj_ref[...], x, preferred_element_type=jnp.float32)

    # GIN MLP with both BatchNorms folded into W/b (eval), then outer ReLU
    h = agg.astype(jnp.bfloat16)
    z = jnp.dot(h, w1_ref[...], preferred_element_type=jnp.float32)
    z = jnp.maximum(z + b1_ref[...], 0.0).astype(jnp.bfloat16)
    z = jnp.dot(z, w2_ref[...], preferred_element_type=jnp.float32)
    x_scr[...] = jnp.maximum(z + b2_ref[...], 0.0).astype(jnp.bfloat16)

    @pl.when(l == pl.num_programs(0) - 1)
    def _():
        n_dst = out_ref.shape[0]
        xd = x_scr[0:n_dst, :]                      # head is row-wise => slice first
        y = jnp.dot(xd, wl1_ref[...], preferred_element_type=jnp.float32)
        y = jnp.maximum(y + bl1_ref[...], 0.0).astype(jnp.bfloat16)
        # F.dropout(p=0.5, training=False) is the identity
        y = jnp.dot(y, wl2_ref[...], preferred_element_type=jnp.float32) + bl2_ref[...]
        # padded class columns carry a -1e30 bias -> exp underflows to 0
        ymax = jnp.max(y, axis=-1, keepdims=True)
        s = y - ymax
        lse = jnp.log(jnp.sum(jnp.exp(s), axis=-1, keepdims=True))
        out_ref[...] = s - lse


def gin_neighsampler_forward(x_pad, adjs_pad, params, n_dst, out_c):
    """x_pad: (N, LANE) bf16; adjs_pad: (L, N, N) bf16; params: stacked/folded/padded."""
    num_layers, n, _ = adjs_pad.shape
    cp = x_pad.shape[1]
    assert n_dst <= n and n_dst % 8 == 0 and n % 8 == 0 and cp % LANE == 0

    logp = pl.pallas_call(
        fused_gin_kernel,
        out_shape=jax.ShapeDtypeStruct((n_dst, cp), jnp.float32),
        grid=(num_layers,),
        in_specs=[
            pl.BlockSpec(memory_space=pltpu.SMEM),                 # eps (L,)
            pl.BlockSpec((n, cp), lambda l: (0, 0)),               # x0 (resident, DMA'd once)
            pl.BlockSpec((None, n, n), lambda l: (l, 0, 0)),       # A_l (streamed per layer)
            pl.BlockSpec((None, cp, cp), lambda l: (l, 0, 0)),     # W1_l (BN1 folded)
            pl.BlockSpec((None, 1, cp), lambda l: (l, 0, 0)),      # b1_l
            pl.BlockSpec((None, cp, cp), lambda l: (l, 0, 0)),     # W2_l (outer BN folded)
            pl.BlockSpec((None, 1, cp), lambda l: (l, 0, 0)),      # b2_l
            pl.BlockSpec((cp, cp), lambda l: (0, 0)),              # head Wl1 (BN folded)
            pl.BlockSpec((1, cp), lambda l: (0, 0)),               # head bl1
            pl.BlockSpec((cp, cp), lambda l: (0, 0)),              # head Wl2
            pl.BlockSpec((1, cp), lambda l: (0, 0)),               # head bl2 (-inf pad cols)
        ],
        out_specs=pl.BlockSpec((n_dst, cp), lambda l: (0, 0)),
        scratch_shapes=[pltpu.VMEM((n, cp), jnp.bfloat16)],        # resident x
        compiler_params=pltpu.CompilerParams(
            dimension_semantics=("arbitrary",),                    # layer loop is a carry
            vmem_limit_bytes=_vmem_limit_bytes()),
    )(params["eps"], x_pad, adjs_pad,
      params["w1"], params["b1"], params["w2"], params["b2"],
      params["wl1"], params["bl1"], params["wl2"], params["bl2"])
    return logp[:, :out_c]                                         # drop padded class cols


# ----------------------------------------------------------------------------
# Parameters: raw (torch-layout, f32) -> fold BN, pad to 128 lanes, stack layers
# ----------------------------------------------------------------------------
def init_raw_params(key, in_c, hidden, out_c, num_layers):
    layers = []
    c_in = in_c
    h2 = 2 * hidden
    for _ in range(num_layers):
        key, *ks = jax.random.split(key, 9)
        layers.append({
            "eps": jnp.float32(0.0),                                         # GINConv train_eps init
            "w1": 0.1 * jax.random.normal(ks[0], (c_in, h2), jnp.float32),   # Lin(in, 2H)
            "b1": 0.01 * jax.random.normal(ks[1], (h2,), jnp.float32),
            "g1": jnp.ones((h2,), jnp.float32),                              # BatchNorm1d(2H)
            "be1": jnp.zeros((h2,), jnp.float32),
            "m1": 0.05 * jax.random.normal(ks[2], (h2,), jnp.float32),
            "v1": 1.0 + 0.1 * jax.random.uniform(ks[3], (h2,), jnp.float32),
            "w2": 0.1 * jax.random.normal(ks[4], (h2, hidden), jnp.float32),  # Lin(2H, H)
            "b2": 0.01 * jax.random.normal(ks[5], (hidden,), jnp.float32),
            "go": jnp.ones((hidden,), jnp.float32),                           # outer BatchNorm1d(H)
            "beo": jnp.zeros((hidden,), jnp.float32),
            "mo": 0.05 * jax.random.normal(ks[6], (hidden,), jnp.float32),
            "vo": 1.0 + 0.1 * jax.random.uniform(ks[7], (hidden,), jnp.float32),
        })
        c_in = hidden
    key, *kh = jax.random.split(key, 7)
    head_raw = {
        "wl1": 0.1 * jax.random.normal(kh[0], (hidden, hidden), jnp.float32),
        "bl1": 0.01 * jax.random.normal(kh[1], (hidden,), jnp.float32),
        "g": jnp.ones((hidden,), jnp.float32),
        "be": jnp.zeros((hidden,), jnp.float32),
        "m": 0.05 * jax.random.normal(kh[2], (hidden,), jnp.float32),
        "v": 1.0 + 0.1 * jax.random.uniform(kh[3], (hidden,), jnp.float32),
        "wl2": 0.1 * jax.random.normal(kh[4], (hidden, out_c), jnp.float32),
        "bl2": 0.01 * jax.random.normal(kh[5], (out_c,), jnp.float32),
    }
    return layers, head_raw


def prepare_params(layers_raw, head_raw, cp=LANE):
    eps, w1s, b1s, w2s, b2s = [], [], [], [], []
    for p in layers_raw:
        s1 = p["g1"] * jax.lax.rsqrt(p["v1"] + BN_EPS)
        w1f = p["w1"] * s1[None, :]
        b1f = (p["b1"] - p["m1"]) * s1 + p["be1"]
        so = p["go"] * jax.lax.rsqrt(p["vo"] + BN_EPS)
        w2f = p["w2"] * so[None, :]
        b2f = (p["b2"] - p["mo"]) * so + p["beo"]
        eps.append(jnp.reshape(p["eps"], ()))
        w1s.append(_pad2(w1f, cp, cp).astype(jnp.bfloat16))
        b1s.append(_pad2(b1f[None, :], 1, cp))
        w2s.append(_pad2(w2f, cp, cp).astype(jnp.bfloat16))
        b2s.append(_pad2(b2f[None, :], 1, cp))
    h = head_raw
    s = h["g"] * jax.lax.rsqrt(h["v"] + BN_EPS)
    wl1f = h["wl1"] * s[None, :]
    bl1f = (h["bl1"] - h["m"]) * s + h["be"]
    out_c = h["wl2"].shape[1]
    bl2p = jnp.full((1, cp), NEG_INF, jnp.float32).at[0, :out_c].set(h["bl2"])
    return {
        "eps": jnp.stack(eps).astype(jnp.float32),          # (L,)
        "w1": jnp.stack(w1s), "b1": jnp.stack(b1s),          # (L,128,128) bf16 / (L,1,128) f32
        "w2": jnp.stack(w2s), "b2": jnp.stack(b2s),
        "wl1": _pad2(wl1f, cp, cp).astype(jnp.bfloat16),
        "bl1": _pad2(bl1f[None, :], 1, cp),
        "wl2": _pad2(h["wl2"], cp, cp).astype(jnp.bfloat16),
        "bl2": bl2p,
    }


# Pure-JAX f32 reference (unfolded BN, unpadded) for a loose sanity check.
def reference_forward(x, adjs, layers_raw, head_raw, n_dst):
    for a, p in zip(adjs, layers_raw):
        h = (1.0 + p["eps"]) * x + a @ x
        z = h @ p["w1"] + p["b1"]
        z = p["g1"] * (z - p["m1"]) / jnp.sqrt(p["v1"] + BN_EPS) + p["be1"]
        z = jnp.maximum(z, 0.0)
        z = z @ p["w2"] + p["b2"]
        z = p["go"] * (z - p["mo"]) / jnp.sqrt(p["vo"] + BN_EPS) + p["beo"]
        x = jnp.maximum(z, 0.0)
    y = x @ head_raw["wl1"] + head_raw["bl1"]
    y = head_raw["g"] * (y - head_raw["m"]) / jnp.sqrt(head_raw["v"] + BN_EPS) + head_raw["be"]
    y = jnp.maximum(y, 0.0)
    y = y @ head_raw["wl2"] + head_raw["bl2"]
    y = y[:n_dst]
    return jax.nn.log_softmax(y, axis=-1)


if __name__ == "__main__":
    N = 256            # nodes in the sampled subgraph
    IN_C = 16          # in_channels
    HID = 32           # hidden_channels
    OUT_C = 8          # out_channels
    NUM_LAYERS = 2
    N_DST = 192        # size[1] of the last bipartite adj

    key = jax.random.PRNGKey(0)
    k_x, k_a, k_p = jax.random.split(key, 3)

    x_raw = jax.random.normal(k_x, (N, IN_C), jnp.float32)
    a_keys = jax.random.split(k_a, NUM_LAYERS)
    # dense 0/1 adjacencies (edge_index -> dense scatter-add matrix), one per layer
    adjs_f32 = [(jax.random.uniform(ak, (N, N)) < 0.1).astype(jnp.float32)
                for ak in a_keys]

    layers_raw, head_raw = init_raw_params(k_p, IN_C, HID, OUT_C, NUM_LAYERS)
    params = prepare_params(layers_raw, head_raw)

    x_pad = _pad2(x_raw, N, LANE).astype(jnp.bfloat16)               # lane-pad + bf16
    adjs_pad = jnp.stack([a.astype(jnp.bfloat16) for a in adjs_f32])  # (L, N, N), 0/1 exact in bf16

    fwd = jax.jit(gin_neighsampler_forward, static_argnums=(3, 4))
    out = jax.block_until_ready(fwd(x_pad, adjs_pad, params, N_DST, OUT_C))

    assert out.shape == (N_DST, OUT_C)
    assert bool(jnp.all(jnp.isfinite(out)))
    # each row of a log_softmax must exponentiate to ~1
    assert bool(jnp.allclose(jnp.sum(jnp.exp(out), axis=-1), 1.0, atol=1e-2))
    # loose check vs. pure-f32 unfolded/unpadded reference (bf16 input/weight noise)
    ref = reference_forward(x_raw, adjs_f32, layers_raw, head_raw, N_DST)
    assert float(jnp.max(jnp.abs(out - ref))) < 0.5
    print("KERNEL_OK")
</pallas_src>

<mosaic_0001>
module attributes {stable_mosaic.version = 11 : i64} {
  func.func @fused_gin_kernel(%arg0: i32, %arg1: memref<2xf32, #tpu.memory_space<smem>>, %arg2: memref<256x128xbf16, #tpu.memory_space<vmem>>, %arg3: memref<1x256x256xbf16, #tpu.memory_space<vmem>>, %arg4: memref<1x128x128xbf16, #tpu.memory_space<vmem>>, %arg5: memref<1x1x128xf32, #tpu.memory_space<vmem>>, %arg6: memref<1x128x128xbf16, #tpu.memory_space<vmem>>, %arg7: memref<1x1x128xf32, #tpu.memory_space<vmem>>, %arg8: memref<128x128xbf16, #tpu.memory_space<vmem>>, %arg9: memref<1x128xf32, #tpu.memory_space<vmem>>, %arg10: memref<128x128xbf16, #tpu.memory_space<vmem>>, %arg11: memref<1x128xf32, #tpu.memory_space<vmem>>, %arg12: memref<192x128xf32, #tpu.memory_space<vmem>>, %arg13: memref<256x128xbf16, #tpu.memory_space<vmem>>) attributes {dimension_semantics = [#tpu.dimension_semantics<arbitrary>], iteration_bounds = array<i64: 2>, scalar_prefetch = 0 : i64, scratch_operands = 1 : i64, tpu.core_type = #tpu.core_type<tc>, window_params = [{transform_indices = @transform_0, window_bounds = array<i64: 2>}, {pipeline_mode = #tpu.pipeline_mode<synchronous>, transform_indices = @transform_1, window_bounds = array<i64: 256, 128>}, {transform_indices = @transform_2, window_bounds = array<i64: 1, 256, 256>}, {transform_indices = @transform_3, window_bounds = array<i64: 1, 128, 128>}, {transform_indices = @transform_4, window_bounds = array<i64: 1, 1, 128>}, {transform_indices = @transform_5, window_bounds = array<i64: 1, 128, 128>}, {transform_indices = @transform_6, window_bounds = array<i64: 1, 1, 128>}, {pipeline_mode = #tpu.pipeline_mode<synchronous>, transform_indices = @transform_7, window_bounds = array<i64: 128, 128>}, {pipeline_mode = #tpu.pipeline_mode<synchronous>, transform_indices = @transform_8, window_bounds = array<i64: 1, 128>}, {pipeline_mode = #tpu.pipeline_mode<synchronous>, transform_indices = @transform_9, window_bounds = array<i64: 128, 128>}, {pipeline_mode = #tpu.pipeline_mode<synchronous>, transform_indices = @transform_10, window_bounds = array<i64: 1, 128>}, {pipeline_mode = #tpu.pipeline_mode<synchronous>, transform_indices = @transform_11, window_bounds = array<i64: 192, 128>}]} {
    %c0_i32 = arith.constant 0 : i32
    %0 = arith.cmpi eq, %arg0, %c0_i32 : i32
    %1 = arith.extui %0 : i1 to i32
    %c0_i32_0 = arith.constant 0 : i32
    %2 = arith.cmpi ne, %1, %c0_i32_0 : i32
    scf.if %2 {
      %c0_25 = arith.constant 0 : index
      %c0_26 = arith.constant 0 : index
      %39 = vector.load %arg2[%c0_25, %c0_26] : memref<256x128xbf16, #tpu.memory_space<vmem>>, vector<256x128xbf16>
      %c0_27 = arith.constant 0 : index
      %c0_28 = arith.constant 0 : index
      %40 = vector.load %arg13[%c0_27, %c0_28] : memref<256x128xbf16, #tpu.memory_space<vmem>>, vector<256x128xbf16>
      tpu.vector_store %arg13[%c0_27, %c0_28], %39 {strides = array<i32>} : memref<256x128xbf16, #tpu.memory_space<vmem>>, vector<256x128xbf16>,
    } else {
    }
    %c0 = arith.constant 0 : index
    %c0_1 = arith.constant 0 : index
    %3 = vector.load %arg13[%c0, %c0_1] : memref<256x128xbf16, #tpu.memory_space<vmem>>, vector<256x128xbf16>
    %4 = arith.index_cast %arg0 : i32 to index
    %5 = memref.load %arg1[%4] : memref<2xf32, #tpu.memory_space<smem>>
    %cst = arith.constant 1.000000e+00 : f32
    %6 = arith.addf %cst, %5 : f32
    %7 = arith.extf %3 : vector<256x128xbf16> to vector<256x128xf32>
    %8 = vector.broadcast %6 : f32 to vector<256x128xf32>
    %9 = arith.mulf %8, %7 : vector<256x128xf32>
    %c0_2 = arith.constant 0 : index
    %c0_3 = arith.constant 0 : index
    %c0_4 = arith.constant 0 : index
    %10 = vector.load %arg3[%c0_2, %c0_3, %c0_4] : memref<1x256x256xbf16, #tpu.memory_space<vmem>>, vector<1x256x256xbf16>
    %11 = vector.shape_cast %10 : vector<1x256x256xbf16> to vector<256x256xbf16>
    %cst_5 = arith.constant dense<0.000000e+00> : vector<256x128xf32>
    %12 = tpu.matmul %11, %3, %cst_5 {dimension_numbers = #tpu.dot_dimension_numbers<[1], [0], [0], [1], [0, 0, 1, 1], [], []>} : vector<256x256xbf16>, vector<256x128xbf16>, vector<256x128xf32> -> vector<256x128xf32>
    %13 = arith.addf %9, %12 : vector<256x128xf32>
    %14 = arith.truncf %13 : vector<256x128xf32> to vector<256x128xbf16>
    %c0_6 = arith.constant 0 : index
    %c0_7 = arith.constant 0 : index
    %c0_8 = arith.constant 0 : index
    %15 = vector.load %arg4[%c0_6, %c0_7, %c0_8] : memref<1x128x128xbf16, #tpu.memory_space<vmem>>, vector<1x128x128xbf16>
    %16 = vector.shape_cast %15 : vector<1x128x128xbf16> to vector<128x128xbf16>
    %cst_9 = arith.constant dense<0.000000e+00> : vector<256x128xf32>
    %17 = tpu.matmul %14, %16, %cst_9 {dimension_numbers = #tpu.dot_dimension_numbers<[1], [0], [0], [1], [0, 0, 1, 1], [], []>} : vector<256x128xbf16>, vector<128x128xbf16>, vector<256x128xf32> -> vector<256x128xf32>
    %c0_10 = arith.constant 0 : index
    %c0_11 = arith.constant 0 : index
    %c0_12 = arith.constant 0 : index
    %18 = vector.load %arg5[%c0_10, %c0_11, %c0_12] : memref<1x1x128xf32, #tpu.memory_space<vmem>>, vector<1x1x128xf32>
    %19 = vector.shape_cast %18 : vector<1x1x128xf32> to vector<1x128xf32>
    %20 = vector.broadcast %19 : vector<1x128xf32> to vector<256x128xf32>
    %21 = arith.addf %17, %20 : vector<256x128xf32>
    %cst_13 = arith.constant 0.000000e+00 : f32
    %22 = vector.broadcast %cst_13 : f32 to vector<256x128xf32>
    %23 = arith.maximumf %21, %22 : vector<256x128xf32>
    %24 = arith.truncf %23 : vector<256x128xf32> to vector<256x128xbf16>
    %c0_14 = arith.constant 0 : index
    %c0_15 = arith.constant 0 : index
    %c0_16 = arith.constant 0 : index
    %25 = vector.load %arg6[%c0_14, %c0_15, %c0_16] : memref<1x128x128xbf16, #tpu.memory_space<vmem>>, vector<1x128x128xbf16>
    %26 = vector.shape_cast %25 : vector<1x128x128xbf16> to vector<128x128xbf16>
    %cst_17 = arith.constant dense<0.000000e+00> : vector<256x128xf32>
    %27 = tpu.matmul %24, %26, %cst_17 {dimension_numbers = #tpu.dot_dimension_numbers<[1], [0], [0], [1], [0, 0, 1, 1], [], []>} : vector<256x128xbf16>, vector<128x128xbf16>, vector<256x128xf32> -> vector<256x128xf32>
    %c0_18 = arith.constant 0 : index
    %c0_19 = arith.constant 0 : index
    %c0_20 = arith.constant 0 : index
    %28 = vector.load %arg7[%c0_18, %c0_19, %c0_20] : memref<1x1x128xf32, #tpu.memory_space<vmem>>, vector<1x1x128xf32>
    %29 = vector.shape_cast %28 : vector<1x1x128xf32> to vector<1x128xf32>
    %30 = vector.broadcast %29 : vector<1x128xf32> to vector<256x128xf32>
    %31 = arith.addf %27, %30 : vector<256x128xf32>
    %cst_21 = arith.constant 0.000000e+00 : f32
    %32 = vector.broadcast %cst_21 : f32 to vector<256x128xf32>
    %33 = arith.maximumf %31, %32 : vector<256x128xf32>
    %34 = arith.truncf %33 : vector<256x128xf32> to vector<256x128xbf16>
    %c0_22 = arith.constant 0 : index
    %c0_23 = arith.constant 0 : index
    %35 = vector.load %arg13[%c0_22, %c0_23] : memref<256x128xbf16, #tpu.memory_space<vmem>>, vector<256x128xbf16>
    tpu.vector_store %arg13[%c0_22, %c0_23], %34 {strides = array<i32>} : memref<256x128xbf16, #tpu.memory_space<vmem>>, vector<256x128xbf16>,
    %c1_i32 = arith.constant 1 : i32
    %36 = arith.cmpi eq, %arg0, %c1_i32 : i32
    %37 = arith.extui %36 : i1 to i32
    %c0_i32_24 = arith.constant 0 : i32
    %38 = arith.cmpi ne, %37, %c0_i32_24 : i32
    scf.if %38 {
      %c0_25 = arith.constant 0 : index
      %c0_26 = arith.constant 0 : index
      %39 = vector.load %arg13[%c0_25, %c0_26] : memref<256x128xbf16, #tpu.memory_space<vmem>>, vector<192x128xbf16>
      %c0_27 = arith.constant 0 : index
      %c0_28 = arith.constant 0 : index
      %40 = vector.load %arg8[%c0_27, %c0_28] : memref<128x128xbf16, #tpu.memory_space<vmem>>, vector<128x128xbf16>
      %cst_29 = arith.constant dense<0.000000e+00> : vector<192x128xf32>
      %41 = tpu.matmul %39, %40, %cst_29 {dimension_numbers = #tpu.dot_dimension_numbers<[1], [0], [0], [1], [0, 0, 1, 1], [], []>} : vector<192x128xbf16>, vector<128x128xbf16>, vector<192x128xf32> -> vector<192x128xf32>
      %c0_30 = arith.constant 0 : index
      %c0_31 = arith.constant 0 : index
      %42 = vector.load %arg9[%c0_30, %c0_31] : memref<1x128xf32, #tpu.memory_space<vmem>>, vector<1x128xf32>
      %43 = vector.broadcast %42 : vector<1x128xf32> to vector<192x128xf32>
      %44 = arith.addf %41, %43 : vector<192x128xf32>
      %cst_32 = arith.constant 0.000000e+00 : f32
      %45 = vector.broadcast %cst_32 : f32 to vector<192x128xf32>
      %46 = arith.maximumf %44, %45 : vector<192x128xf32>
      %47 = arith.truncf %46 : vector<192x128xf32> to vector<192x128xbf16>
      %c0_33 = arith.constant 0 : index
      %c0_34 = arith.constant 0 : index
      %48 = vector.load %arg10[%c0_33, %c0_34] : memref<128x128xbf16, #tpu.memory_space<vmem>>, vector<128x128xbf16>
      %cst_35 = arith.constant dense<0.000000e+00> : vector<192x128xf32>
      %49 = tpu.matmul %47, %48, %cst_35 {dimension_numbers = #tpu.dot_dimension_numbers<[1], [0], [0], [1], [0, 0, 1, 1], [], []>} : vector<192x128xbf16>, vector<128x128xbf16>, vector<192x128xf32> -> vector<192x128xf32>
      %c0_36 = arith.constant 0 : index
      %c0_37 = arith.constant 0 : index
      %50 = vector.load %arg11[%c0_36, %c0_37] : memref<1x128xf32, #tpu.memory_space<vmem>>, vector<1x128xf32>
      %51 = vector.broadcast %50 : vector<1x128xf32> to vector<192x128xf32>
      %52 = arith.addf %49, %51 : vector<192x128xf32>
      %cst_38 = arith.constant dense<0xFF800000> : vector<192xf32>
      %53 = vector.multi_reduction <maximumf>, %52, %cst_38 [1] : vector<192x128xf32> to vector<192xf32>
      %54 = vector.shape_cast %53 : vector<192xf32> to vector<192x1xf32>
      %55 = vector.broadcast %54 : vector<192x1xf32> to vector<192x128xf32>
      %56 = arith.subf %52, %55 : vector<192x128xf32>
      %57 = math.exp %56 : vector<192x128xf32>
      %cst_39 = arith.constant dense<0.000000e+00> : vector<192xf32>
      %58 = vector.multi_reduction <add>, %57, %cst_39 [1] : vector<192x128xf32> to vector<192xf32>
      %59 = vector.shape_cast %58 : vector<192xf32> to vector<192x1xf32>
      %60 = math.log %59 : vector<192x1xf32>
      %61 = vector.broadcast %60 : vector<192x1xf32> to vector<192x128xf32>
      %62 = arith.subf %56, %61 : vector<192x128xf32>
      %c0_40 = arith.constant 0 : index
      %c0_41 = arith.constant 0 : index
      %63 = vector.load %arg12[%c0_40, %c0_41] : memref<192x128xf32, #tpu.memory_space<vmem>>, vector<192x128xf32>
      tpu.vector_store %arg12[%c0_40, %c0_41], %62 {strides = array<i32>} : memref<192x128xf32, #tpu.memory_space<vmem>>, vector<192x128xf32>,
    } else {
    }
    return
  }
  func.func @transform_0(%arg0: i32) -> i32 {
    %c0_i32 = arith.constant 0 : i32
    %c0_i32_0 = arith.constant 0 : i32
    return %c0_i32 : i32
  }
  func.func @transform_1(%arg0: i32) -> (i32, i32) {
    %c0_i32 = arith.constant 0 : i32
    %c0_i32_0 = arith.constant 0 : i32
    %c0_i32_1 = arith.constant 0 : i32
    return %c0_i32, %c0_i32_0 : i32, i32
  }
  func.func @transform_2(%arg0: i32) -> (i32, i32, i32) {
    %c0_i32 = arith.constant 0 : i32
    %c0_i32_0 = arith.constant 0 : i32
    %c0_i32_1 = arith.constant 0 : i32
    return %arg0, %c0_i32, %c0_i32_0 : i32, i32, i32
  }
  func.func @transform_3(%arg0: i32) -> (i32, i32, i32) {
    %c0_i32 = arith.constant 0 : i32
    %c0_i32_0 = arith.constant 0 : i32
    %c0_i32_1 = arith.constant 0 : i32
    return %arg0, %c0_i32, %c0_i32_0 : i32, i32, i32
  }
  func.func @transform_4(%arg0: i32) -> (i32, i32, i32) {
    %c0_i32 = arith.constant 0 : i32
    %c0_i32_0 = arith.constant 0 : i32
    %c0_i32_1 = arith.constant 0 : i32
    return %arg0, %c0_i32, %c0_i32_0 : i32, i32, i32
  }
  func.func @transform_5(%arg0: i32) -> (i32, i32, i32) {
    %c0_i32 = arith.constant 0 : i32
    %c0_i32_0 = arith.constant 0 : i32
    %c0_i32_1 = arith.constant 0 : i32
    return %arg0, %c0_i32, %c0_i32_0 : i32, i32, i32
  }
  func.func @transform_6(%arg0: i32) -> (i32, i32, i32) {
    %c0_i32 = arith.constant 0 : i32
    %c0_i32_0 = arith.constant 0 : i32
    %c0_i32_1 = arith.constant 0 : i32
    return %arg0, %c0_i32, %c0_i32_0 : i32, i32, i32
  }
  func.func @transform_7(%arg0: i32) -> (i32, i32) {
    %c0_i32 = arith.constant 0 : i32
    %c0_i32_0 = arith.constant 0 : i32
    %c0_i32_1 = arith.constant 0 : i32
    return %c0_i32, %c0_i32_0 : i32, i32
  }
  func.func @transform_8(%arg0: i32) -> (i32, i32) {
    %c0_i32 = arith.constant 0 : i32
    %c0_i32_0 = arith.constant 0 : i32
    %c0_i32_1 = arith.constant 0 : i32
    return %c0_i32, %c0_i32_0 : i32, i32
  }
  func.func @transform_9(%arg0: i32) -> (i32, i32) {
    %c0_i32 = arith.constant 0 : i32
    %c0_i32_0 = arith.constant 0 : i32
    %c0_i32_1 = arith.constant 0 : i32
    return %c0_i32, %c0_i32_0 : i32, i32
  }
  func.func @transform_10(%arg0: i32) -> (i32, i32) {
    %c0_i32 = arith.constant 0 : i32
    %c0_i32_0 = arith.constant 0 : i32
    %c0_i32_1 = arith.constant 0 : i32
    return %c0_i32, %c0_i32_0 : i32, i32
  }
  func.func @transform_11(%arg0: i32) -> (i32, i32) {
    %c0_i32 = arith.constant 0 : i32
    %c0_i32_0 = arith.constant 0 : i32
    %c0_i32_1 = arith.constant 0 : i32
    return %c0_i32, %c0_i32_0 : i32, i32
  }
}

</mosaic_0001>

<llo_original>
// kernel: gin_neighsampler_forward.1
$region0: #{gin_neighsampler_forward.1}
  #allocation0 [shape = 'u32[]', space=smem, size = 0x4, offset = 0x4, fixed_abs, tag = 'smem constant byte address 0x4 - core index']
  #allocation1 [shape = 'u32[144,128]{1,0:T(1,128)}', space=vmem, size = 0x12000, scoped, tag = 'internal scratch']
  #allocation2 [shape = 'bf16[256,128]{1,0:T(16,128)(2,1)}', space=vmem, size = 0x10000, scoped, tag = 'scratch operand']
  %s0 = inlined_call_operand.vmem [shape: f32[2], index: 0, kind: input, shape index: {}]
  %s1 = inlined_call_operand.hbm [shape: bf16[256,128], index: 1, kind: input, shape index: {}]
  %s2 = inlined_call_operand.hbm [shape: bf16[2,256,256], index: 2, kind: input, shape index: {}]
  %s3 = inlined_call_operand.hbm [shape: bf16[2,128,128], index: 3, kind: input, shape index: {}]
  %s4 = inlined_call_operand.vmem [shape: f32[2,1,128], index: 4, kind: input, shape index: {}]
  %s5 = inlined_call_operand.hbm [shape: bf16[2,128,128], index: 5, kind: input, shape index: {}]
  %s6 = inlined_call_operand.vmem [shape: f32[2,1,128], index: 6, kind: input, shape index: {}]
  %s7 = inlined_call_operand.hbm [shape: bf16[128,128], index: 7, kind: input, shape index: {}]
  %s8 = inlined_call_operand.vmem [shape: f32[1,128], index: 8, kind: input, shape index: {}]
  %s9 = inlined_call_operand.hbm [shape: bf16[128,128], index: 9, kind: input, shape index: {}]
  %s10 = inlined_call_operand.vmem [shape: f32[1,128], index: 10, kind: input, shape index: {}]
  %s11 = inlined_call_operand.vmem [shape: f32[192,128], index: 11, kind: output, shape index: {}]
  %s12 = sld [smem:[#allocation0]]
  $region113: #{gin_neighsampler_forward.1} parent=0
    _
  %s14 = ssub.s32 1, %s12
  %s15 = scalar_select 0, %s14, %s12
  $region1: #{gin_neighsampler_forward.1} parent=0
    #allocation3 [shape = 'u8[512]{0}', space=smem, size = 0x200, scoped, tag = 'input window, operand 0, single buffered']
    #allocation4 [shape = 's32[2]{0}', space=sflag, size = 0x8, scoped, tag = 'scoped memory for gin_neighsampler_forward.1']
    #allocation5 [shape = 's32[2]{0}', space=sflag, size = 0x8, scoped, tag = 'scoped memory for gin_neighsampler_forward.1']
    #allocation6 [shape = 'u8[65536]{0}', space=vmem, size = 0x10000, scoped, tag = 'input window, operand 1, single buffered']
    #allocation7 [shape = 'u8[262144]{0}', space=vmem, size = 0x40000, scoped, tag = 'input window, operand 2']
    #allocation8 [shape = 's32[2]{0}', space=sflag, size = 0x8, scoped, tag = 'scoped memory for gin_neighsampler_forward.1']
    #allocation9 [shape = 'u8[65536]{0}', space=vmem, size = 0x10000, scoped, tag = 'input window, operand 3']
    #allocation10 [shape = 'u8[65536]{0}', space=vmem, size = 0x10000, scoped, tag = 'input window, operand 5']
    #allocation11 [shape = 's32[2]{0}', space=sflag, size = 0x8, scoped, tag = 'scoped memory for gin_neighsampler_forward.1']
    #allocation12 [shape = 'u8[32768]{0}', space=vmem, size = 0x8000, scoped, tag = 'input window, operand 7, single buffered']
    #allocation13 [shape = 'u8[32768]{0}', space=vmem, size = 0x8000, scoped, tag = 'input window, operand 9, single buffered']
    #allocation14 [shape = 's32[1]{0}', space=sflag, size = 0x4, scoped, tag = 'scoped memory for gin_neighsampler_forward.1']
    %16 = vsyncpa [#allocation5], 0
    %17 = vsyncpa [#allocation4], 0
    %18 = vsyncpa [#allocation8], 0
    %s19 = scalar_lea.sflag [#allocation8], 1
    %20 = vsyncpa %s19, 0
    %21 = vsyncpa [#allocation11], 0
    %s22 = scalar_lea.sflag [#allocation11], 1
    %23 = vsyncpa %s22, 0
    %24 = vsyncpa [#allocation14], 0
    loop: start=0, step=1, limit=4
    $region2: #{gin_neighsampler_forward.1} parent=1 // loop_pre_header
      _
    $region3: #{gin_neighsampler_forward.1} parent=1 // loop_header
      %s26 = sphi 0, %s30
      %p27 = scmp.ge.s32.totalorder %s26, 4
      %s34 = sphi 0, %s34
      %s36 = sphi 0, %s34
      %s37 = sphi 0, %s36
      %s51 = sphi 0, %s37
      %s55 = sphi 0, %s55
      %s57 = sphi 0, %s55
      %s58 = sphi 0, %s57
      %s72 = sphi 0, %s58
      %s78 = sphi 0, %s80
      %s81 = sphi 0, %s78
      %s82 = sphi 0, %s81
      %s98 = sphi 0, %s82
      %s104 = sphi 0, %s106
      %s107 = sphi 0, %s104
      %s108 = sphi 0, %s107
      %s124 = sphi 0, %s108
      %s130 = sphi 0, %s132
      %s133 = sphi 0, %s130
      %s134 = sphi 0, %s133
      %s150 = sphi 0, %s134
      %s156 = sphi 0, %s158
      %s159 = sphi 0, %s156
      %s160 = sphi 0, %s159
      %s176 = sphi 0, %s160
      %s182 = sphi 0, %s184
      %s185 = sphi 0, %s182
      %s186 = sphi 0, %s185
      %s202 = sphi 0, %s186
      %s206 = sphi 0, %s206
      %s208 = sphi 0, %s206
      %s209 = sphi 0, %s208
      %s223 = sphi 0, %s209
      %s227 = sphi 0, %s227
      %s229 = sphi 0, %s227
      %s230 = sphi 0, %s229
      %s244 = sphi 0, %s230
      %s248 = sphi 0, %s248
      %s250 = sphi 0, %s248
      %s251 = sphi 0, %s250
      %s265 = sphi 0, %s251
      %s269 = sphi 0, %s269
      %s271 = sphi 0, %s269
      %s272 = sphi 0, %s271
      %s286 = sphi 0, %s272
      %s290 = sphi 0, %s290
      %s292 = sphi 0, %s290
      %s293 = sphi 0, %s292
      %s307 = sphi 0, %s293
    $region4: #{gin_neighsampler_forward.1} parent=1 // loop_header_branch
      %29 = sbr.rel (%p27) target = $region8
    $region5: #{gin_neighsampler_forward.1} parent=1 // loop_body
      %s31 = ssub.s32 %s26, 1
      %s32 = ssub.s32 %s26, 2
      %s33 = sadd.s32 %s26, 1
      %s35 = sadd.s32 %s34, 1
      %p38 = scmp.eq.s32.totalorder %s26, 1
      %p39 = scmp.ne.s32.totalorder %s34, %s36
      %p40 = scmp.eq.s32.totalorder %s26, 0
      %p41 = por %p39, %p40
      %p42 = scmp.ne.s32.totalorder %s34, %s36
      %p43 = scmp.eq.s32.totalorder %s31, 1
      %p44 = por %p42, %p43
      %p45 = scmp.ne.s32.totalorder %s36, %s37
      %p46 = scmp.eq.s32.totalorder %s31, 0
      %p47 = por %p45, %p46
      %p48 = scmp.ne.s32.totalorder %s36, %s37
      %p49 = scmp.eq.s32.totalorder %s32, 1
      %p50 = por %p48, %p49
      %p52 = scmp.ne.s32.totalorder %s37, %s51
      %p53 = scmp.eq.s32.totalorder %s32, 0
      %p54 = por %p52, %p53
      %s56 = sadd.s32 %s55, 1
      %p59 = scmp.eq.s32.totalorder %s26, 1
      %p60 = scmp.ne.s32.totalorder %s55, %s57
      %p61 = scmp.eq.s32.totalorder %s26, 0
      %p62 = por %p60, %p61
      %p63 = scmp.ne.s32.totalorder %s55, %s57
      %p64 = scmp.eq.s32.totalorder %s31, 1
      %p65 = por %p63, %p64
      %p66 = scmp.ne.s32.totalorder %s57, %s58
      %p67 = scmp.eq.s32.totalorder %s31, 0
      %p68 = por %p66, %p67
      %p69 = scmp.ne.s32.totalorder %s57, %s58
      %p70 = scmp.eq.s32.totalorder %s32, 1
      %p71 = por %p69, %p70
      %p73 = scmp.ne.s32.totalorder %s58, %s72
      %p74 = scmp.eq.s32.totalorder %s32, 0
      %p75 = por %p73, %p74
      %s76 = ssub.s32 %s26, %s33
      %p77 = scmp.eq.s32.totalorder %s76, 0
      %s79 = sadd.s32 %s78, 1
      %s80 = scalar_select %p77, %s78, %s79
      %p83 = pneg %p77
      %p84 = scmp.eq.s32.totalorder %s26, 1
      %p85 = por %p83, %p84
      %p86 = scmp.ne.s32.totalorder %s78, %s81
      %p87 = scmp.eq.s32.totalorder %s26, 0
      %p88 = por %p86, %p87
      %p89 = scmp.ne.s32.totalorder %s78, %s81
      %p90 = scmp.eq.s32.totalorder %s31, 1
      %p91 = por %p89, %p90
      %p92 = scmp.ne.s32.totalorder %s81, %s82
      %p93 = scmp.eq.s32.totalorder %s31, 0
      %p94 = por %p92, %p93
      %p95 = scmp.ne.s32.totalorder %s81, %s82
      %p96 = scmp.eq.s32.totalorder %s32, 1
      %p97 = por %p95, %p96
      %p99 = scmp.ne.s32.totalorder %s82, %s98
      %p100 = scmp.eq.s32.totalorder %s32, 0
      %p101 = por %p99, %p100
      %s102 = ssub.s32 %s26, %s33
      %p103 = scmp.eq.s32.totalorder %s102, 0
      %s105 = sadd.s32 %s104, 1
      %s106 = scalar_select %p103, %s104, %s105
      %p109 = pneg %p103
      %p110 = scmp.eq.s32.totalorder %s26, 1
      %p111 = por %p109, %p110
      %p112 = scmp.ne.s32.totalorder %s104, %s107
      %p113 = scmp.eq.s32.totalorder %s26, 0
      %p114 = por %p112, %p113
      %p115 = scmp.ne.s32.totalorder %s104, %s107
      %p116 = scmp.eq.s32.totalorder %s31, 1
      %p117 = por %p115, %p116
      %p118 = scmp.ne.s32.totalorder %s107, %s108
      %p119 = scmp.eq.s32.totalorder %s31, 0
      %p120 = por %p118, %p119
      %p121 = scmp.ne.s32.totalorder %s107, %s108
      %p122 = scmp.eq.s32.totalorder %s32, 1
      %p123 = por %p121, %p122
      %p125 = scmp.ne.s32.totalorder %s108, %s124
      %p126 = scmp.eq.s32.totalorder %s32, 0
      %p127 = por %p125, %p126
      %s128 = ssub.s32 %s26, %s33
      %p129 = scmp.eq.s32.totalorder %s128, 0
      %s131 = sadd.s32 %s130, 1
      %s132 = scalar_select %p129, %s130, %s131
      %p135 = pneg %p129
      %p136 = scmp.eq.s32.totalorder %s26, 1
      %p137 = por %p135, %p136
      %p138 = scmp.ne.s32.totalorder %s130, %s133
      %p139 = scmp.eq.s32.totalorder %s26, 0
      %p140 = por %p138, %p139
      %p141 = scmp.ne.s32.totalorder %s130, %s133
      %p142 = scmp.eq.s32.totalorder %s31, 1
      %p143 = por %p141, %p142
      %p144 = scmp.ne.s32.totalorder %s133, %s134
      %p145 = scmp.eq.s32.totalorder %s31, 0
      %p146 = por %p144, %p145
      %p147 = scmp.ne.s32.totalorder %s133, %s134
      %p148 = scmp.eq.s32.totalorder %s32, 1
      %p149 = por %p147, %p148
      %p151 = scmp.ne.s32.totalorder %s134, %s150
      %p152 = scmp.eq.s32.totalorder %s32, 0
      %p153 = por %p151, %p152
      %s154 = ssub.s32 %s26, %s33
      %p155 = scmp.eq.s32.totalorder %s154, 0
      %s157 = sadd.s32 %s156, 1
      %s158 = scalar_select %p155, %s156, %s157
      %p161 = pneg %p155
      %p162 = scmp.eq.s32.totalorder %s26, 1
      %p163 = por %p161, %p162
      %p164 = scmp.ne.s32.totalorder %s156, %s159
      %p165 = scmp.eq.s32.totalorder %s26, 0
      %p166 = por %p164, %p165
      %p167 = scmp.ne.s32.totalorder %s156, %s159
      %p168 = scmp.eq.s32.totalorder %s31, 1
      %p169 = por %p167, %p168
      %p170 = scmp.ne.s32.totalorder %s159, %s160
      %p171 = scmp.eq.s32.totalorder %s31, 0
      %p172 = por %p170, %p171
      %p173 = scmp.ne.s32.totalorder %s159, %s160
      %p174 = scmp.eq.s32.totalorder %s32, 1
      %p175 = por %p173, %p174
      %p177 = scmp.ne.s32.totalorder %s160, %s176
      %p178 = scmp.eq.s32.totalorder %s32, 0
      %p179 = por %p177, %p178
      %s180 = ssub.s32 %s26, %s33
      %p181 = scmp.eq.s32.totalorder %s180, 0
      %s183 = sadd.s32 %s182, 1
      %s184 = scalar_select %p181, %s182, %s183
      %p187 = pneg %p181
      %p188 = scmp.eq.s32.totalorder %s26, 1
      %p189 = por %p187, %p188
      %p190 = scmp.ne.s32.totalorder %s182, %s185
      %p191 = scmp.eq.s32.totalorder %s26, 0
      %p192 = por %p190, %p191
      %p193 = scmp.ne.s32.totalorder %s182, %s185
      %p194 = scmp.eq.s32.totalorder %s31, 1
      %p195 = por %p193, %p194
      %p196 = scmp.ne.s32.totalorder %s185, %s186
      %p197 = scmp.eq.s32.totalorder %s31, 0
      %p198 = por %p196, %p197
      %p199 = scmp.ne.s32.totalorder %s185, %s186
      %p200 = scmp.eq.s32.totalorder %s32, 1
      %p201 = por %p199, %p200
      %p203 = scmp.ne.s32.totalorder %s186, %s202
      %p204 = scmp.eq.s32.totalorder %s32, 0
      %p205 = por %p203, %p204
      %s207 = sadd.s32 %s206, 1
      %p210 = scmp.eq.s32.totalorder %s26, 1
      %p211 = scmp.ne.s32.totalorder %s206, %s208
      %p212 = scmp.eq.s32.totalorder %s26, 0
      %p213 = por %p211, %p212
      %p214 = scmp.ne.s32.totalorder %s206, %s208
      %p215 = scmp.eq.s32.totalorder %s31, 1
      %p216 = por %p214, %p215
      %p217 = scmp.ne.s32.totalorder %s208, %s209
      %p218 = scmp.eq.s32.totalorder %s31, 0
      %p219 = por %p217, %p218
      %p220 = scmp.ne.s32.totalorder %s208, %s209
      %p221 = scmp.eq.s32.totalorder %s32, 1
      %p222 = por %p220, %p221
      %p224 = scmp.ne.s32.totalorder %s209, %s223
      %p225 = scmp.eq.s32.totalorder %s32, 0
      %p226 = por %p224, %p225
      %s228 = sadd.s32 %s227, 1
      %p231 = scmp.eq.s32.totalorder %s26, 1
      %p232 = scmp.ne.s32.totalorder %s227, %s229
      %p233 = scmp.eq.s32.totalorder %s26, 0
      %p234 = por %p232, %p233
      %p235 = scmp.ne.s32.totalorder %s227, %s229
      %p236 = scmp.eq.s32.totalorder %s31, 1
      %p237 = por %p235, %p236
      %p238 = scmp.ne.s32.totalorder %s229, %s230
      %p239 = scmp.eq.s32.totalorder %s31, 0
      %p240 = por %p238, %p239
      %p241 = scmp.ne.s32.totalorder %s229, %s230
      %p242 = scmp.eq.s32.totalorder %s32, 1
      %p243 = por %p241, %p242
      %p245 = scmp.ne.s32.totalorder %s230, %s244
      %p246 = scmp.eq.s32.totalorder %s32, 0
      %p247 = por %p245, %p246
      %s249 = sadd.s32 %s248, 1
      %p252 = scmp.eq.s32.totalorder %s26, 1
      %p253 = scmp.ne.s32.totalorder %s248, %s250
      %p254 = scmp.eq.s32.totalorder %s26, 0
      %p255 = por %p253, %p254
      %p256 = scmp.ne.s32.totalorder %s248, %s250
      %p257 = scmp.eq.s32.totalorder %s31, 1
      %p258 = por %p256, %p257
      %p259 = scmp.ne.s32.totalorder %s250, %s251
      %p260 = scmp.eq.s32.totalorder %s31, 0
      %p261 = por %p259, %p260
      %p262 = scmp.ne.s32.totalorder %s250, %s251
      %p263 = scmp.eq.s32.totalorder %s32, 1
      %p264 = por %p262, %p263
      %p266 = scmp.ne.s32.totalorder %s251, %s265
      %p267 = scmp.eq.s32.totalorder %s32, 0
      %p268 = por %p266, %p267
      %s270 = sadd.s32 %s269, 1
      %p273 = scmp.eq.s32.totalorder %s26, 1
      %p274 = scmp.ne.s32.totalorder %s269, %s271
      %p275 = scmp.eq.s32.totalorder %s26, 0
      %p276 = por %p274, %p275
      %p277 = scmp.ne.s32.totalorder %s269, %s271
      %p278 = scmp.eq.s32.totalorder %s31, 1
      %p279 = por %p277, %p278
      %p280 = scmp.ne.s32.totalorder %s271, %s272
      %p281 = scmp.eq.s32.totalorder %s31, 0
      %p282 = por %p280, %p281
      %p283 = scmp.ne.s32.totalorder %s271, %s272
      %p284 = scmp.eq.s32.totalorder %s32, 1
      %p285 = por %p283, %p284
      %p287 = scmp.ne.s32.totalorder %s272, %s286
      %p288 = scmp.eq.s32.totalorder %s32, 0
      %p289 = por %p287, %p288
      %s291 = sadd.s32 %s290, 1
      %p294 = scmp.eq.s32.totalorder %s26, 1
      %p295 = scmp.ne.s32.totalorder %s290, %s292
      %p296 = scmp.eq.s32.totalorder %s26, 0
      %p297 = por %p295, %p296
      %p298 = scmp.ne.s32.totalorder %s290, %s292
      %p299 = scmp.eq.s32.totalorder %s31, 1
      %p300 = por %p298, %p299
      %p301 = scmp.ne.s32.totalorder %s292, %s293
      %p302 = scmp.eq.s32.totalorder %s31, 0
      %p303 = por %p301, %p302
      %p304 = scmp.ne.s32.totalorder %s292, %s293
      %p305 = scmp.eq.s32.totalorder %s32, 1
      %p306 = por %p304, %p305
      %p308 = scmp.ne.s32.totalorder %s293, %s307
      %p309 = scmp.eq.s32.totalorder %s32, 0
      %p310 = por %p308, %p309
      %p311 = scmp.le.s32.totalorder 1, %s26
      %p312 = scmp.lt.s32.totalorder %s26, 3
      %p313 = pnand %p311, %p312
      %p314 = pneg %p313
      // Predicated region
      $region9: #{gin_neighsampler_forward.1} parent=5 // pred_check
        _
      $region10: #{gin_neighsampler_forward.1} parent=5 // pred_check_branch
        %316 = sbr.rel (%p313) target = $region12
      $region11: #{gin_neighsampler_forward.1} parent=5 // pred_region
        %s317 = ssub.s32 %s26, 1
        // Predicated region
        $region13: #{gin_neighsampler_forward.1} parent=11 // pred_check
          %p318 = pneg %p47
        $region14: #{gin_neighsampler_forward.1} parent=11 // pred_check_branch
          %320 = sbr.rel (%p318) target = $region16
        $region15: #{gin_neighsampler_forward.1} parent=11 // pred_region
          %s322 = ssub.s32 16, 16
          %323 = vsyncadd [#allocation5], %s322
          %s325 = sshll.u32 %s0, 4
          %s326 = int_to_ptr.vmem [resolvable:$true] %s325
          %328 = dma.vmem_to_smem %s326, 16, [#allocation3], [#allocation5]
        $region16: #{gin_neighsampler_forward.1} parent=11 // pred_fallthru
          _
        // Predicated region
        $region17: #{gin_neighsampler_forward.1} parent=11 // pred_check
          %p329 = pneg %p68
        $region18: #{gin_neighsampler_forward.1} parent=11 // pred_check_branch
          %331 = sbr.rel (%p329) target = $region20
        $region19: #{gin_neighsampler_forward.1} parent=11 // pred_region
          %s333 = ssub.s32 2048, 2048
          %334 = vsyncadd [#allocation4], %s333
          %s335 = sshll.u32 [#allocation6], 4
          %s336 = int_to_ptr.vmem [resolvable:$true] %s335
          %341 = dma.hbm_to_vmem [thread:$0]  %s1, 2048, %s336, [#allocation4], 64, 64, 4
        $region20: #{gin_neighsampler_forward.1} parent=11 // pred_fallthru
          _
        // Predicated region
        $region21: #{gin_neighsampler_forward.1} parent=11 // pred_check
          %p342 = pneg %p219
        $region22: #{gin_neighsampler_forward.1} parent=11 // pred_check_branch
          %344 = sbr.rel (%p342) target = $region24
        $region23: #{gin_neighsampler_forward.1} parent=11 // pred_region
          %s346 = ssub.s32 1024, 1024
          %347 = vsyncadd [#allocation11], %s346
          %s348 = sshll.u32 [#allocation12], 4
          %s349 = int_to_ptr.vmem [resolvable:$true] %s348
          %354 = dma.hbm_to_vmem [thread:$0]  %s7, 1024, %s349, [#allocation11], 64, 64, 4
        $region24: #{gin_neighsampler_forward.1} parent=11 // pred_fallthru
          _
        // Predicated region
        $region25: #{gin_neighsampler_forward.1} parent=11 // pred_check
          %p355 = pneg %p240
        $region26: #{gin_neighsampler_forward.1} parent=11 // pred_check_branch
          %357 = sbr.rel (%p355) target = $region28
        $region27: #{gin_neighsampler_forward.1} parent=11 // pred_region
          _
        $region28: #{gin_neighsampler_forward.1} parent=11 // pred_fallthru
          _
        // Predicated region
        $region29: #{gin_neighsampler_forward.1} parent=11 // pred_check
          %p358 = pneg %p261
        $region30: #{gin_neighsampler_forward.1} parent=11 // pred_check_branch
          %360 = sbr.rel (%p358) target = $region32
        $region31: #{gin_neighsampler_forward.1} parent=11 // pred_region
          %s362 = ssub.s32 1024, 1024
          %363 = vsyncadd [#allocation14], %s362
          %s364 = sshll.u32 [#allocation13], 4
          %s365 = int_to_ptr.vmem [resolvable:$true] %s364
          %370 = dma.hbm_to_vmem [thread:$0]  %s9, 1024, %s365, [#allocation14], 64, 64, 4
        $region32: #{gin_neighsampler_forward.1} parent=11 // pred_fallthru
          _
        // Predicated region
        $region33: #{gin_neighsampler_forward.1} parent=11 // pred_check
          %p371 = pneg %p282
        $region34: #{gin_neighsampler_forward.1} parent=11 // pred_check_branch
          %373 = sbr.rel (%p371) target = $region36
        $region35: #{gin_neighsampler_forward.1} parent=11 // pred_region
          _
        $region36: #{gin_neighsampler_forward.1} parent=11 // pred_fallthru
          _
      $region12: #{gin_neighsampler_forward.1} parent=5 // pred_fallthru
        _
      %p374 = scmp.lt.s32.totalorder %s26, 2
      // Predicated region
      $region37: #{gin_neighsampler_forward.1} parent=5 // pred_check
        %p375 = pneg %p374
      $region38: #{gin_neighsampler_forward.1} parent=5 // pred_check_branch
        %377 = sbr.rel (%p375) target = $region40
      $region39: #{gin_neighsampler_forward.1} parent=5 // pred_region
        // Predicated region
        $region41: #{gin_neighsampler_forward.1} parent=39 // pred_check
          %p378 = pneg %p88
        $region42: #{gin_neighsampler_forward.1} parent=39 // pred_check_branch
          %380 = sbr.rel (%p378) target = $region44
        $region43: #{gin_neighsampler_forward.1} parent=39 // pred_region
          %s381 = sand.u32 %s26, 1
          %s382 = scalar_lea.sflag [#allocation8], %s381
          %s383 = sand.u32 %s78, 1
          %s384 = smul.addr %s383, 256
          %s385 = scalar_lea.vmem [#allocation7], %s384
          %s387 = ssub.s32 4096, 4096
          %388 = vsyncadd %s382, %s387
          %s389 = smul.addr %s26, 64
          %s390 = smul.addr %s389, 64
          %s391 = scalar_lea.hbm %s2, %s390
          %s392 = sshll.u32 %s385, 4
          %s393 = int_to_ptr.vmem [resolvable:$true] %s392
          %398 = dma.hbm_to_vmem [thread:$0]  %s391, 4096, %s393, %s382, 128, 128, 8
        $region44: #{gin_neighsampler_forward.1} parent=39 // pred_fallthru
          _
        // Predicated region
        $region45: #{gin_neighsampler_forward.1} parent=39 // pred_check
          %p399 = pneg %p114
        $region46: #{gin_neighsampler_forward.1} parent=39 // pred_check_branch
          %401 = sbr.rel (%p399) target = $region48
        $region47: #{gin_neighsampler_forward.1} parent=39 // pred_region
          %s402 = sand.u32 %s26, 1
          %s403 = scalar_lea.sflag [#allocation8], %s402
          %s404 = sand.u32 %s104, 1
          %s405 = smul.addr %s404, 64
          %s406 = scalar_lea.vmem [#allocation9], %s405
          %s408 = ssub.s32 1024, 1024
          %409 = vsyncadd %s403, %s408
          %s410 = smul.addr %s26, 16
          %s411 = smul.addr %s410, 64
          %s412 = scalar_lea.hbm %s3, %s411
          %s413 = sshll.u32 %s406, 4
          %s414 = int_to_ptr.vmem [resolvable:$true] %s413
          %419 = dma.hbm_to_vmem [thread:$0]  %s412, 1024, %s414, %s403, 64, 64, 4
        $region48: #{gin_neighsampler_forward.1} parent=39 // pred_fallthru
          _
        // Predicated region
        $region49: #{gin_neighsampler_forward.1} parent=39 // pred_check
          %p420 = pneg %p140
        $region50: #{gin_neighsampler_forward.1} parent=39 // pred_check_branch
          %422 = sbr.rel (%p420) target = $region52
        $region51: #{gin_neighsampler_forward.1} parent=39 // pred_region
          %p423 = scmp.lt.s32.totalorder %s26, 1
          %s424 = scalar_select %p423, %s26, 1
          %s425 = scalar_lea.vmem %s4, %s424
        $region52: #{gin_neighsampler_forward.1} parent=39 // pred_fallthru
          _
        // Predicated region
        $region53: #{gin_neighsampler_forward.1} parent=39 // pred_check
          %p426 = pneg %p166
        $region54: #{gin_neighsampler_forward.1} parent=39 // pred_check_branch
          %428 = sbr.rel (%p426) target = $region56
        $region55: #{gin_neighsampler_forward.1} parent=39 // pred_region
          %s429 = sand.u32 %s26, 1
          %s430 = scalar_lea.sflag [#allocation11], %s429
          %s431 = sand.u32 %s156, 1
          %s432 = smul.addr %s431, 64
          %s433 = scalar_lea.vmem [#allocation10], %s432
          %s435 = ssub.s32 1024, 1024
          %436 = vsyncadd %s430, %s435
          %s437 = smul.addr %s26, 16
          %s438 = smul.addr %s437, 64
          %s439 = scalar_lea.hbm %s5, %s438
          %s440 = sshll.u32 %s433, 4
          %s441 = int_to_ptr.vmem [resolvable:$true] %s440
          %446 = dma.hbm_to_vmem [thread:$0]  %s439, 1024, %s441, %s430, 64, 64, 4
        $region56: #{gin_neighsampler_forward.1} parent=39 // pred_fallthru
          _
        // Predicated region
        $region57: #{gin_neighsampler_forward.1} parent=39 // pred_check
          %p447 = pneg %p192
        $region58: #{gin_neighsampler_forward.1} parent=39 // pred_check_branch
          %449 = sbr.rel (%p447) target = $region60
        $region59: #{gin_neighsampler_forward.1} parent=39 // pred_region
          %p450 = scmp.lt.s32.totalorder %s26, 1
          %s451 = scalar_select %p450, %s26, 1
          %s452 = scalar_lea.vmem %s6, %s451
        $region60: #{gin_neighsampler_forward.1} parent=39 // pred_fallthru
          _
      $region40: #{gin_neighsampler_forward.1} parent=5 // pred_fallthru
        _
      %p453 = scmp.le.s32.totalorder 1, %s26
      %p454 = scmp.lt.s32.totalorder %s26, 3
      %p455 = pnand %p453, %p454
      %p456 = pneg %p455
      // Predicated region
      $region61: #{gin_neighsampler_forward.1} parent=5 // pred_check
        _
      $region62: #{gin_neighsampler_forward.1} parent=5 // pred_check_branch
        %458 = sbr.rel (%p455) target = $region64
      $region63: #{gin_neighsampler_forward.1} parent=5 // pred_region
        %s459 = ssub.s32 %s26, 1
        // Predicated region
        $region65: #{gin_neighsampler_forward.1} parent=63 // pred_check
          %p460 = pneg %p47
        $region66: #{gin_neighsampler_forward.1} parent=63 // pred_check_branch
          %462 = sbr.rel (%p460) target = $region68
        $region67: #{gin_neighsampler_forward.1} parent=63 // pred_region
          %463 = dma.done [#allocation5], 16
        $region68: #{gin_neighsampler_forward.1} parent=63 // pred_fallthru
          _
        // Predicated region
        $region69: #{gin_neighsampler_forward.1} parent=63 // pred_check
          %p464 = pneg %p68
        $region70: #{gin_neighsampler_forward.1} parent=63 // pred_check_branch
          %466 = sbr.rel (%p464) target = $region72
        $region71: #{gin_neighsampler_forward.1} parent=63 // pred_region
          %467 = dma.done [#allocation4], 2048
        $region72: #{gin_neighsampler_forward.1} parent=63 // pred_fallthru
          _
        %s468 = sand.u32 %s31, 1
        %s469 = scalar_lea.sflag [#allocation8], %s468
        %s470 = sand.u32 %s81, 1
        %s471 = smul.addr %s470, 256
        %s472 = scalar_lea.vmem [#allocation7], %s471
        // Predicated region
        $region73: #{gin_neighsampler_forward.1} parent=63 // pred_check
          %p473 = pneg %p94
        $region74: #{gin_neighsampler_forward.1} parent=63 // pred_check_branch
          %475 = sbr.rel (%p473) target = $region76
        $region75: #{gin_neighsampler_forward.1} parent=63 // pred_region
          %476 = dma.done %s469, 4096
        $region76: #{gin_neighsampler_forward.1} parent=63 // pred_fallthru
          _
        %s477 = sand.u32 %s31, 1
        %s478 = scalar_lea.sflag [#allocation8], %s477
        %s479 = sand.u32 %s107, 1
        %s480 = smul.addr %s479, 64
        %s481 = scalar_lea.vmem [#allocation9], %s480
        // Predicated region
        $region77: #{gin_neighsampler_forward.1} parent=63 // pred_check
          %p482 = pneg %p120
        $region78: #{gin_neighsampler_forward.1} parent=63 // pred_check_branch
          %484 = sbr.rel (%p482) target = $region80
        $region79: #{gin_neighsampler_forward.1} parent=63 // pred_region
          %485 = dma.done %s478, 1024
        $region80: #{gin_neighsampler_forward.1} parent=63 // pred_fallthru
          _
        %s486 = sand.u32 %s31, 1
        %s487 = scalar_lea.sflag [#allocation11], %s486
        %s488 = sand.u32 %s159, 1
        %s489 = smul.addr %s488, 64
        %s490 = scalar_lea.vmem [#allocation10], %s489
        // Predicated region
        $region81: #{gin_neighsampler_forward.1} parent=63 // pred_check
          %p491 = pneg %p172
        $region82: #{gin_neighsampler_forward.1} parent=63 // pred_check_branch
          %493 = sbr.rel (%p491) target = $region84
        $region83: #{gin_neighsampler_forward.1} parent=63 // pred_region
          %494 = dma.done %s487, 1024
        $region84: #{gin_neighsampler_forward.1} parent=63 // pred_fallthru
          _
        // Predicated region
        $region85: #{gin_neighsampler_forward.1} parent=63 // pred_check
          %p495 = pneg %p219
        $region86: #{gin_neighsampler_forward.1} parent=63 // pred_check_branch
          %497 = sbr.rel (%p495) target = $region88
        $region87: #{gin_neighsampler_forward.1} parent=63 // pred_region
          %498 = dma.done [#allocation11], 1024
        $region88: #{gin_neighsampler_forward.1} parent=63 // pred_fallthru
          _
        // Predicated region
        $region89: #{gin_neighsampler_forward.1} parent=63 // pred_check
          %p499 = pneg %p261
        $region90: #{gin_neighsampler_forward.1} parent=63 // pred_check_branch
          %501 = sbr.rel (%p499) target = $region92
        $region91: #{gin_neighsampler_forward.1} parent=63 // pred_region
          %502 = dma.done [#allocation14], 1024
        $region92: #{gin_neighsampler_forward.1} parent=63 // pred_fallthru
          _
        %503 = sfence
        %p504 = pneg %p47
        %p505 = pneg %p44
        %p506 = pneg %p68
        %p507 = pneg %p65
        %s508 = sand.u32 %s31, 1
        %s509 = scalar_lea.sflag [#allocation8], %s508
        %s510 = sand.u32 %s81, 1
        %s511 = smul.addr %s510, 256
        %s512 = scalar_lea.vmem [#allocation7], %s511
        %p513 = pneg %p94
        %p514 = pneg %p91
        %s515 = sand.u32 %s31, 1
        %s516 = scalar_lea.sflag [#allocation8], %s515
        %s517 = sand.u32 %s107, 1
        %s518 = smul.addr %s517, 64
        %s519 = scalar_lea.vmem [#allocation9], %s518
        %p520 = pneg %p120
        %p521 = pneg %p117
        %p522 = scmp.lt.s32.totalorder %s31, 1
        %s523 = scalar_select %p522, %s31, 1
        %s524 = scalar_lea.vmem %s4, %s523
        %p525 = pneg %p146
        %p526 = pneg %p143
        %s527 = sand.u32 %s31, 1
        %s528 = scalar_lea.sflag [#allocation11], %s527
        %s529 = sand.u32 %s159, 1
        %s530 = smul.addr %s529, 64
        %s531 = scalar_lea.vmem [#allocation10], %s530
        %p532 = pneg %p172
        %p533 = pneg %p169
        %p534 = scmp.lt.s32.totalorder %s31, 1
        %s535 = scalar_select %p534, %s31, 1
        %s536 = scalar_lea.vmem %s6, %s535
        %p537 = pneg %p198
        %p538 = pneg %p195
        %p539 = pneg %p219
        %p540 = pneg %p216
        %p541 = pneg %p240
        %p542 = pneg %p237
        %p543 = pneg %p261
        %p544 = pneg %p258
        %p545 = pneg %p282
        %p546 = pneg %p279
        %p547 = pneg %p303
        %p548 = pneg %p300
        %p549 = scmp.lt.s32.totalorder %s31, 1
        %s550 = scalar_select %p549, %s31, 1
        %s551 = scalar_lea.vmem %s4, %s550
        %p552 = scmp.lt.s32.totalorder %s31, 1
        %s553 = scalar_select %p552, %s31, 1
        %s554 = scalar_lea.vmem %s6, %s553
        %p556 = scmp.eq.s32.totalorder %s31, 0
        // Predicated region
        $region93: #{gin_neighsampler_forward.1} parent=63 // pred_check
          %p557 = pneg %p556
        $region94: #{gin_neighsampler_forward.1} parent=63 // pred_check_branch
          %559 = sbr.rel (%p557) target = $region96
        $region95: #{gin_neighsampler_forward.1} parent=63 // pred_region
          %v560 = vld [vmem:[#allocation6] sm:$0xf]
          %v561 = vld [vmem:[#allocation6 + $0x4] sm:$0xf]
          %v562 = vld [vmem:[#allocation6 + $0x8] sm:$0xf]
          %v563 = vld [vmem:[#allocation6 + $0xc] sm:$0xf]
          %v564 = vld [vmem:[#allocation6 + $0x10] sm:$0xf]
          %v565 = vld [vmem:[#allocation6 + $0x14] sm:$0xf]
          %v566 = vld [vmem:[#allocation6 + $0x18] sm:$0xf]
          %v567 = vld [vmem:[#allocation6 + $0x1c] sm:$0xf]
          %v568 = vld [vmem:[#allocation6 + $0x20] sm:$0xf]
          %v569 = vld [vmem:[#allocation6 + $0x24] sm:$0xf]
          %v570 = vld [vmem:[#allocation6 + $0x28] sm:$0xf]
          %v571 = vld [vmem:[#allocation6 + $0x2c] sm:$0xf]
          %v572 = vld [vmem:[#allocation6 + $0x30] sm:$0xf]
          %v573 = vld [vmem:[#allocation6 + $0x34] sm:$0xf]
          %v574 = vld [vmem:[#allocation6 + $0x38] sm:$0xf]
          %v575 = vld [vmem:[#allocation6 + $0x3c] sm:$0xf]
          %v576 = vld [vmem:[#allocation6 + $0x40] sm:$0xf]
          %v577 = vld [vmem:[#allocation6 + $0x44] sm:$0xf]
          %v578 = vld [vmem:[#allocation6 + $0x48] sm:$0xf]
          %v579 = vld [vmem:[#allocation6 + $0x4c] sm:$0xf]
          %v580 = vld [vmem:[#allocation6 + $0x50] sm:$0xf]
          %v581 = vld [vmem:[#allocation6 + $0x54] sm:$0xf]
          %v582 = vld [vmem:[#allocation6 + $0x58] sm:$0xf]
          %v583 = vld [vmem:[#allocation6 + $0x5c] sm:$0xf]
          %v584 = vld [vmem:[#allocation6 + $0x60] sm:$0xf]
          %v585 = vld [vmem:[#allocation6 + $0x64] sm:$0xf]
          %v586 = vld [vmem:[#allocation6 + $0x68] sm:$0xf]
          %v587 = vld [vmem:[#allocation6 + $0x6c] sm:$0xf]
          %v588 = vld [vmem:[#allocation6 + $0x70] sm:$0xf]
          %v589 = vld [vmem:[#allocation6 + $0x74] sm:$0xf]
          %v590 = vld [vmem:[#allocation6 + $0x78] sm:$0xf]
          %v591 = vld [vmem:[#allocation6 + $0x7c] sm:$0xf]
          %v624 = vunpack.c.l.b16 %v560
          %v625 = vunpack.c.l.b16 %v561
          %v626 = vunpack.c.l.b16 %v562
          %v627 = vunpack.c.l.b16 %v563
          %v628 = vunpack.c.l.b16 %v564
          %v629 = vunpack.c.l.b16 %v565
          %v630 = vunpack.c.l.b16 %v566
          %v631 = vunpack.c.l.b16 %v567
          %v632 = vunpack.c.l.b16 %v568
          %v633 = vunpack.c.l.b16 %v569
          %v634 = vunpack.c.l.b16 %v570
          %v635 = vunpack.c.l.b16 %v571
          %v636 = vunpack.c.l.b16 %v572
          %v637 = vunpack.c.l.b16 %v573
          %v638 = vunpack.c.l.b16 %v574
          %v639 = vunpack.c.l.b16 %v575
          %v640 = vunpack.c.l.b16 %v576
          %v641 = vunpack.c.l.b16 %v577
          %v642 = vunpack.c.l.b16 %v578
          %v643 = vunpack.c.l.b16 %v579
          %v644 = vunpack.c.l.b16 %v580
          %v645 = vunpack.c.l.b16 %v581
          %v646 = vunpack.c.l.b16 %v582
          %v647 = vunpack.c.l.b16 %v583
          %v648 = vunpack.c.l.b16 %v584
          %v649 = vunpack.c.l.b16 %v585
          %v650 = vunpack.c.l.b16 %v586
          %v651 = vunpack.c.l.b16 %v587
          %v652 = vunpack.c.l.b16 %v588
          %v653 = vunpack.c.l.b16 %v589
          %v654 = vunpack.c.l.b16 %v590
          %v655 = vunpack.c.l.b16 %v591
          %v656 = vpack.c.b16 %v625, %v624
          %v657 = vpack.c.b16 %v627, %v626
          %v658 = vpack.c.b16 %v629, %v628
          %v659 = vpack.c.b16 %v631, %v630
          %v660 = vpack.c.b16 %v633, %v632
          %v661 = vpack.c.b16 %v635, %v634
          %v662 = vpack.c.b16 %v637, %v636
          %v663 = vpack.c.b16 %v639, %v638
          %v664 = vpack.c.b16 %v641, %v640
          %v665 = vpack.c.b16 %v643, %v642
          %v666 = vpack.c.b16 %v645, %v644
          %v667 = vpack.c.b16 %v647, %v646
          %v668 = vpack.c.b16 %v649, %v648
          %v669 = vpack.c.b16 %v651, %v650
          %v670 = vpack.c.b16 %v653, %v652
          %v671 = vpack.c.b16 %v655, %v654
          %688 = vst [vmem:[#allocation2] sm:$0xff] %v656
          %689 = vst [vmem:[#allocation2 + $0x8] sm:$0xff] %v657
          %690 = vst [vmem:[#allocation2 + $0x10] sm:$0xff] %v658
          %691 = vst [vmem:[#allocation2 + $0x18] sm:$0xff] %v659
          %692 = vst [vmem:[#allocation2 + $0x20] sm:$0xff] %v660
          %693 = vst [vmem:[#allocation2 + $0x28] sm:$0xff] %v661
          %694 = vst [vmem:[#allocation2 + $0x30] sm:$0xff] %v662
          %695 = vst [vmem:[#allocation2 + $0x38] sm:$0xff] %v663
          %696 = vst [vmem:[#allocation2 + $0x40] sm:$0xff] %v664
          %697 = vst [vmem:[#allocation2 + $0x48] sm:$0xff] %v665
          %698 = vst [vmem:[#allocation2 + $0x50] sm:$0xff] %v666
          %699 = vst [vmem:[#allocation2 + $0x58] sm:$0xff] %v667
          %700 = vst [vmem:[#allocation2 + $0x60] sm:$0xff] %v668
          %701 = vst [vmem:[#allocation2 + $0x68] sm:$0xff] %v669
          %702 = vst [vmem:[#allocation2 + $0x70] sm:$0xff] %v670
          %703 = vst [vmem:[#allocation2 + $0x78] sm:$0xff] %v671
        $region96: #{gin_neighsampler_forward.1} parent=63 // pred_fallthru
          _
        %v704 = vld [vmem:[#allocation2] sm:$0xff]
        %v705 = vld [vmem:[#allocation2 + $0x8] sm:$0xff]
        %v706 = vld [vmem:[#allocation2 + $0x10] sm:$0xff]
        %v707 = vld [vmem:[#allocation2 + $0x18] sm:$0xff]
        %v708 = vld [vmem:[#allocation2 + $0x20] sm:$0xff]
        %v709 = vld [vmem:[#allocation2 + $0x28] sm:$0xff]
        %v710 = vld [vmem:[#allocation2 + $0x30] sm:$0xff]
        %v711 = vld [vmem:[#allocation2 + $0x38] sm:$0xff]
        %v712 = vld [vmem:[#allocation2 + $0x40] sm:$0xff]
        %v713 = vld [vmem:[#allocation2 + $0x48] sm:$0xff]
        %v714 = vld [vmem:[#allocation2 + $0x50] sm:$0xff]
        %v715 = vld [vmem:[#allocation2 + $0x58] sm:$0xff]
        %v716 = vld [vmem:[#allocation2 + $0x60] sm:$0xff]
        %v717 = vld [vmem:[#allocation2 + $0x68] sm:$0xff]
        %v718 = vld [vmem:[#allocation2 + $0x70] sm:$0xff]
        %v719 = vld [vmem:[#allocation2 + $0x78] sm:$0xff]
        %s720 = sld [smem:[#allocation3 + %s31]]
        %s721 = sadd.f32 %s720, 1.0
        %v722 = vunpack.c.l.bf16 %v704
        %v723 = vunpack.c.h.bf16 %v704
        %v724 = vunpack.c.l.bf16 %v705
        %v725 = vunpack.c.h.bf16 %v705
        %v726 = vunpack.c.l.bf16 %v706
        %v727 = vunpack.c.h.bf16 %v706
        %v728 = vunpack.c.l.bf16 %v707
        %v729 = vunpack.c.h.bf16 %v707
        %v730 = vunpack.c.l.bf16 %v708
        %v731 = vunpack.c.h.bf16 %v708
        %v732 = vunpack.c.l.bf16 %v709
        %v733 = vunpack.c.h.bf16 %v709
        %v734 = vunpack.c.l.bf16 %v710
        %v735 = vunpack.c.h.bf16 %v710
        %v736 = vunpack.c.l.bf16 %v711
        %v737 = vunpack.c.h.bf16 %v711
        %v738 = vunpack.c.l.bf16 %v712
        %v739 = vunpack.c.h.bf16 %v712
        %v740 = vunpack.c.l.bf16 %v713
        %v741 = vunpack.c.h.bf16 %v713
        %v742 = vunpack.c.l.bf16 %v714
        %v743 = vunpack.c.h.bf16 %v714
        %v744 = vunpack.c.l.bf16 %v715
        %v745 = vunpack.c.h.bf16 %v715
        %v746 = vunpack.c.l.bf16 %v716
        %v747 = vunpack.c.h.bf16 %v716
        %v748 = vunpack.c.l.bf16 %v717
        %v749 = vunpack.c.h.bf16 %v717
        %v750 = vunpack.c.l.bf16 %v718
        %v751 = vunpack.c.h.bf16 %v718
        %v752 = vunpack.c.l.bf16 %v719
        %v753 = vunpack.c.h.bf16 %v719
        %v754 = vstv %s721
        %v755 = vmul.f32 %v754, %v722
        %v756 = vmul.f32 %v754, %v723
        %v757 = vmul.f32 %v754, %v724
        %v758 = vmul.f32 %v754, %v725
        %v759 = vmul.f32 %v754, %v726
        %v760 = vmul.f32 %v754, %v727
        %v761 = vmul.f32 %v754, %v728
        %v762 = vmul.f32 %v754, %v729
        %v763 = vmul.f32 %v754, %v730
        %v764 = vmul.f32 %v754, %v731
        %v765 = vmul.f32 %v754, %v732
        %v766 = vmul.f32 %v754, %v733
        %v767 = vmul.f32 %v754, %v734
        %v768 = vmul.f32 %v754, %v735
        %v769 = vmul.f32 %v754, %v736
        %v770 = vmul.f32 %v754, %v737
        %v771 = vmul.f32 %v754, %v738
        %v772 = vmul.f32 %v754, %v739
        %v773 = vmul.f32 %v754, %v740
        %v774 = vmul.f32 %v754, %v741
        %v775 = vmul.f32 %v754, %v742
        %v776 = vmul.f32 %v754, %v743
        %v777 = vmul.f32 %v754, %v744
        %v778 = vmul.f32 %v754, %v745
        %v779 = vmul.f32 %v754, %v746
        %v780 = vmul.f32 %v754, %v747
        %v781 = vmul.f32 %v754, %v748
        %v782 = vmul.f32 %v754, %v749
        %v783 = vmul.f32 %v754, %v750
        %v784 = vmul.f32 %v754, %v751
        %v785 = vmul.f32 %v754, %v752
        %v786 = vmul.f32 %v754, %v753
        %v787 = vld [vmem:[%s472] sm:$0xff]
        %v788 = vld [vmem:[%s472 + $0x8] sm:$0xff]
        %v789 = vld [vmem:[%s472 + $0x10] sm:$0xff]
        %v790 = vld [vmem:[%s472 + $0x18] sm:$0xff]
        %v791 = vld [vmem:[%s472 + $0x20] sm:$0xff]
        %v792 = vld [vmem:[%s472 + $0x28] sm:$0xff]
        %v793 = vld [vmem:[%s472 + $0x30] sm:$0xff]
        %v794 = vld [vmem:[%s472 + $0x38] sm:$0xff]
        %v795 = vld [vmem:[%s472 + $0x40] sm:$0xff]
        %v796 = vld [vmem:[%s472 + $0x48] sm:$0xff]
        %v797 = vld [vmem:[%s472 + $0x50] sm:$0xff]
        %v798 = vld [vmem:[%s472 + $0x58] sm:$0xff]
        %v799 = vld [vmem:[%s472 + $0x60] sm:$0xff]
        %v800 = vld [vmem:[%s472 + $0x68] sm:$0xff]
        %v801 = vld [vmem:[%s472 + $0x70] sm:$0xff]
        %v802 = vld [vmem:[%s472 + $0x78] sm:$0xff]
        %v803 = vld [vmem:[%s472 + $0x80] sm:$0xff]
        %v804 = vld [vmem:[%s472 + $0x88] sm:$0xff]
        %v805 = vld [vmem:[%s472 + $0x90] sm:$0xff]
        %v806 = vld [vmem:[%s472 + $0x98] sm:$0xff]
        %v807 = vld [vmem:[%s472 + $0xa0] sm:$0xff]
        %v808 = vld [vmem:[%s472 + $0xa8] sm:$0xff]
        %v809 = vld [vmem:[%s472 + $0xb0] sm:$0xff]
        %v810 = vld [vmem:[%s472 + $0xb8] sm:$0xff]
        %v811 = vld [vmem:[%s472 + $0xc0] sm:$0xff]
        %v812 = vld [vmem:[%s472 + $0xc8] sm:$0xff]
        %v813 = vld [vmem:[%s472 + $0xd0] sm:$0xff]
        %v814 = vld [vmem:[%s472 + $0xd8] sm:$0xff]
        %v815 = vld [vmem:[%s472 + $0xe0] sm:$0xff]
        %v816 = vld [vmem:[%s472 + $0xe8] sm:$0xff]
        %v817 = vld [vmem:[%s472 + $0xf0] sm:$0xff]
        %v818 = vld [vmem:[%s472 + $0xf8] sm:$0xff]
        %v851 = vunpack.c.l.b16 %v787
        %v852 = vunpack.c.h.b16 %v787
        %v853 = vunpack.c.l.b16 %v788
        %v854 = vunpack.c.h.b16 %v788
        %v855 = vunpack.c.l.b16 %v789
        %v856 = vunpack.c.h.b16 %v789
        %v857 = vunpack.c.l.b16 %v790
        %v858 = vunpack.c.h.b16 %v790
        %v859 = vunpack.c.l.b16 %v791
        %v860 = vunpack.c.h.b16 %v791
        %v861 = vunpack.c.l.b16 %v792
        %v862 = vunpack.c.h.b16 %v792
        %v863 = vunpack.c.l.b16 %v793
        %v864 = vunpack.c.h.b16 %v793
        %v865 = vunpack.c.l.b16 %v794
        %v866 = vunpack.c.h.b16 %v794
        %v867 = vunpack.c.l.b16 %v795
        %v868 = vunpack.c.h.b16 %v795
        %v869 = vunpack.c.l.b16 %v796
        %v870 = vunpack.c.h.b16 %v796
        %v871 = vunpack.c.l.b16 %v797
        %v872 = vunpack.c.h.b16 %v797
        %v873 = vunpack.c.l.b16 %v798
        %v874 = vunpack.c.h.b16 %v798
        %v875 = vunpack.c.l.b16 %v799
        %v876 = vunpack.c.h.b16 %v799
        %v877 = vunpack.c.l.b16 %v800
        %v878 = vunpack.c.h.b16 %v800
        %v879 = vunpack.c.l.b16 %v801
        %v880 = vunpack.c.h.b16 %v801
        %v881 = vunpack.c.l.b16 %v802
        %v882 = vunpack.c.h.b16 %v802
        %v883 = vunpack.c.l.b16 %v803
        %v884 = vunpack.c.h.b16 %v803
        %v885 = vunpack.c.l.b16 %v804
        %v886 = vunpack.c.h.b16 %v804
        %v887 = vunpack.c.l.b16 %v805
        %v888 = vunpack.c.h.b16 %v805
        %v889 = vunpack.c.l.b16 %v806
        %v890 = vunpack.c.h.b16 %v806
        %v891 = vunpack.c.l.b16 %v807
        %v892 = vunpack.c.h.b16 %v807
        %v893 = vunpack.c.l.b16 %v808
        %v894 = vunpack.c.h.b16 %v808
        %v895 = vunpack.c.l.b16 %v809
        %v896 = vunpack.c.h.b16 %v809
        %v897 = vunpack.c.l.b16 %v810
        %v898 = vunpack.c.h.b16 %v810
        %v899 = vunpack.c.l.b16 %v811
        %v900 = vunpack.c.h.b16 %v811
        %v901 = vunpack.c.l.b16 %v812
        %v902 = vunpack.c.h.b16 %v812
        %v903 = vunpack.c.l.b16 %v813
        %v904 = vunpack.c.h.b16 %v813
        %v905 = vunpack.c.l.b16 %v814
        %v906 = vunpack.c.h.b16 %v814
        %v907 = vunpack.c.l.b16 %v815
        %v908 = vunpack.c.h.b16 %v815
        %v909 = vunpack.c.l.b16 %v816
        %v910 = vunpack.c.h.b16 %v816
        %v911 = vunpack.c.l.b16 %v817
        %v912 = vunpack.c.h.b16 %v817
        %v913 = vunpack.c.l.b16 %v818
        %v914 = vunpack.c.h.b16 %v818
        %v915 = vpack.c.b16 %v853, %v851
        %v916 = vpack.c.b16 %v854, %v852
        %v917 = vpack.c.b16 %v857, %v855
        %v918 = vpack.c.b16 %v858, %v856
        %v919 = vpack.c.b16 %v861, %v859
        %v920 = vpack.c.b16 %v862, %v860
        %v921 = vpack.c.b16 %v865, %v863
        %v922 = vpack.c.b16 %v866, %v864
        %v923 = vpack.c.b16 %v869, %v867
        %v924 = vpack.c.b16 %v870, %v868
        %v925 = vpack.c.b16 %v873, %v871
        %v926 = vpack.c.b16 %v874, %v872
        %v927 = vpack.c.b16 %v877, %v875
        %v928 = vpack.c.b16 %v878, %v876
        %v929 = vpack.c.b16 %v881, %v879
        %v930 = vpack.c.b16 %v882, %v880
        %v931 = vpack.c.b16 %v885, %v883
        %v932 = vpack.c.b16 %v886, %v884
        %v933 = vpack.c.b16 %v889, %v887
        %v934 = vpack.c.b16 %v890, %v888
        %v935 = vpack.c.b16 %v893, %v891
        %v936 = vpack.c.b16 %v894, %v892
        %v937 = vpack.c.b16 %v897, %v895
        %v938 = vpack.c.b16 %v898, %v896
        %v939 = vpack.c.b16 %v901, %v899
        %v940 = vpack.c.b16 %v902, %v900
        %v941 = vpack.c.b16 %v905, %v903
        %v942 = vpack.c.b16 %v906, %v904
        %v943 = vpack.c.b16 %v909, %v907
        %v944 = vpack.c.b16 %v910, %v908
        %v945 = vpack.c.b16 %v913, %v911
        %v946 = vpack.c.b16 %v914, %v912
        %979 = vmatprep.subr.bf16.mxu0 0
        %980 = vmatpush1.bf16.msra.mxu0 %v704
        %981 = vmatprep.subr.bf16.mxu0 0
        %982 = vmatpush1.bf16.msra.mxu0 %v705
        %983 = vmatprep.subr.bf16.mxu0 0
        %984 = vmatpush1.bf16.msra.mxu0 %v706
        %985 = vmatprep.subr.bf16.mxu0 0
        %986 = vmatpush1.bf16.msra.mxu0 %v707
        %987 = vmatprep.subr.bf16.mxu0 0
        %988 = vmatpush1.bf16.msra.mxu0 %v708
        %989 = vmatprep.subr.bf16.mxu0 0
        %990 = vmatpush1.bf16.msra.mxu0 %v709
        %991 = vmatprep.subr.bf16.mxu0 0
        %992 = vmatpush1.bf16.msra.mxu0 %v710
        %993 = vmatprep.subr.bf16.mxu0 0
        %994 = vmatpush1.bf16.msra.mxu0 %v711
        %995 = vmatprep.subr.bf16.mxu0 0
        %996 = vmatpush1.bf16.msra.mxu0 %v712
        %997 = vmatprep.subr.bf16.mxu0 0
        %998 = vmatpush1.bf16.msra.mxu0 %v713
        %999 = vmatprep.subr.bf16.mxu0 0
        %1000 = vmatpush1.bf16.msra.mxu0 %v714
        %1001 = vmatprep.subr.bf16.mxu0 0
        %1002 = vmatpush1.bf16.msra.mxu0 %v715
        %1003 = vmatprep.subr.bf16.mxu0 0
        %1004 = vmatpush1.bf16.msra.mxu0 %v716
        %1005 = vmatprep.subr.bf16.mxu0 0
        %1006 = vmatpush1.bf16.msra.mxu0 %v717
        %1007 = vmatprep.subr.bf16.mxu0 0
        %1008 = vmatpush1.bf16.msra.mxu0 %v718
        %1009 = vmatprep.subr.bf16.mxu0 0
        %1010 = vmatpush1.bf16.msra.mxu0 %v719
        %1011 = vmatprep.mubr.bf16.mxu0 %v916
        %1012 = vmatmul.mubr.bf16.gmra.mrb[0].mxu0 %v915
        %v1013 = vpop.f32.mrb[0].mxu0
        %v1014 = vadd.f32 0.0, %v1013
        %v1015 = vpop.f32.mrb[0].mxu0
        %v1016 = vpop.f32.mrb[0].mxu0
        %v1017 = vadd.f32 0.0, %v1016
        %v1018 = vpop.f32.mrb[0].mxu0
        %1019 = vmatprep.mubr.bf16.mxu0 %v918
        %1020 = vmatmul.mubr.bf16.gmra.mrb[0].mxu0 %v917
        %v1021 = vpop.f32.mrb[0].mxu0
        %v1022 = vadd.f32 0.0, %v1021
        %v1023 = vpop.f32.mrb[0].mxu0
        %v1024 = vpop.f32.mrb[0].mxu0
        %v1025 = vadd.f32 0.0, %v1024
        %v1026 = vpop.f32.mrb[0].mxu0
        %1027 = vmatprep.mubr.bf16.mxu0 %v920
        %1028 = vmatmul.mubr.bf16.gmra.mrb[0].mxu0 %v919
        %v1029 = vpop.f32.mrb[0].mxu0
        %v1030 = vadd.f32 0.0, %v1029
        %v1031 = vpop.f32.mrb[0].mxu0
        %v1032 = vpop.f32.mrb[0].mxu0
        %v1033 = vadd.f32 0.0, %v1032
        %v1034 = vpop.f32.mrb[0].mxu0
        %1035 = vmatprep.mubr.bf16.mxu0 %v922
        %1036 = vmatmul.mubr.bf16.gmra.mrb[0].mxu0 %v921
        %v1037 = vpop.f32.mrb[0].mxu0
        %v1038 = vadd.f32 0.0, %v1037
        %v1039 = vpop.f32.mrb[0].mxu0
        %v1040 = vpop.f32.mrb[0].mxu0
        %v1041 = vadd.f32 0.0, %v1040
        %v1042 = vpop.f32.mrb[0].mxu0
        %1043 = vmatprep.mubr.bf16.mxu0 %v924
        %1044 = vmatmul.mubr.bf16.gmra.mrb[0].mxu0 %v923
        %v1045 = vpop.f32.mrb[0].mxu0
        %v1046 = vadd.f32 0.0, %v1045
        %v1047 = vpop.f32.mrb[0].mxu0
        %v1048 = vpop.f32.mrb[0].mxu0
        %v1049 = vadd.f32 0.0, %v1048
        %v1050 = vpop.f32.mrb[0].mxu0
        %1051 = vmatprep.mubr.bf16.mxu0 %v926
        %1052 = vmatmul.mubr.bf16.gmra.mrb[0].mxu0 %v925
        %v1053 = vpop.f32.mrb[0].mxu0
        %v1054 = vadd.f32 0.0, %v1053
        %v1055 = vpop.f32.mrb[0].mxu0
        %v1056 = vpop.f32.mrb[0].mxu0
        %v1057 = vadd.f32 0.0, %v1056
        %v1058 = vpop.f32.mrb[0].mxu0
        %1059 = vmatprep.mubr.bf16.mxu0 %v928
        %1060 = vmatmul.mubr.bf16.gmra.mrb[0].mxu0 %v927
        %v1061 = vpop.f32.mrb[0].mxu0
        %v1062 = vadd.f32 0.0, %v1061
        %v1063 = vpop.f32.mrb[0].mxu0
        %v1064 = vpop.f32.mrb[0].mxu0
        %v1065 = vadd.f32 0.0, %v1064
        %v1066 = vpop.f32.mrb[0].mxu0
        %1067 = vmatprep.mubr.bf16.mxu0 %v930
        %1068 = vmatmul.mubr.bf16.gmra.mrb[0].mxu0 %v929
        %v1069 = vpop.f32.mrb[0].mxu0
        %v1070 = vadd.f32 0.0, %v1069
        %v1071 = vpop.f32.mrb[0].mxu0
        %v1072 = vpop.f32.mrb[0].mxu0
        %v1073 = vadd.f32 0.0, %v1072
        %v1074 = vpop.f32.mrb[0].mxu0
        %1075 = vmatprep.mubr.bf16.mxu0 %v932
        %1076 = vmatmul.mubr.bf16.gmra.mrb[0].mxu0 %v931
        %v1077 = vpop.f32.mrb[0].mxu0
        %v1078 = vadd.f32 0.0, %v1077
        %v1079 = vpop.f32.mrb[0].mxu0
        %v1080 = vpop.f32.mrb[0].mxu0
        %v1081 = vadd.f32 0.0, %v1080
        %v1082 = vpop.f32.mrb[0].mxu0
        %1083 = vmatprep.mubr.bf16.mxu0 %v934
        %1084 = vmatmul.mubr.bf16.gmra.mrb[0].mxu0 %v933
        %v1085 = vpop.f32.mrb[0].mxu0
        %v1086 = vadd.f32 0.0, %v1085
        %v1087 = vpop.f32.mrb[0].mxu0
        %v1088 = vpop.f32.mrb[0].mxu0
        %v1089 = vadd.f32 0.0, %v1088
        %v1090 = vpop.f32.mrb[0].mxu0
        %1091 = vmatprep.mubr.bf16.mxu0 %v936
        %1092 = vmatmul.mubr.bf16.gmra.mrb[0].mxu0 %v935
        %v1093 = vpop.f32.mrb[0].mxu0
        %v1094 = vadd.f32 0.0, %v1093
        %v1095 = vpop.f32.mrb[0].mxu0
        %v1096 = vpop.f32.mrb[0].mxu0
        %v1097 = vadd.f32 0.0, %v1096
        %v1098 = vpop.f32.mrb[0].mxu0
        %1099 = vmatprep.mubr.bf16.mxu0 %v938
        %1100 = vmatmul.mubr.bf16.gmra.mrb[0].mxu0 %v937
        %v1101 = vpop.f32.mrb[0].mxu0
        %v1102 = vadd.f32 0.0, %v1101
        %v1103 = vpop.f32.mrb[0].mxu0
        %v1104 = vpop.f32.mrb[0].mxu0
        %v1105 = vadd.f32 0.0, %v1104
        %v1106 = vpop.f32.mrb[0].mxu0
        %1107 = vmatprep.mubr.bf16.mxu0 %v940
        %1108 = vmatmul.mubr.bf16.gmra.mrb[0].mxu0 %v939
        %v1109 = vpop.f32.mrb[0].mxu0
        %v1110 = vadd.f32 0.0, %v1109
        %v1111 = vpop.f32.mrb[0].mxu0
        %v1112 = vpop.f32.mrb[0].mxu0
        %v1113 = vadd.f32 0.0, %v1112
        %v1114 = vpop.f32.mrb[0].mxu0
        %1115 = vmatprep.mubr.bf16.mxu0 %v942
        %1116 = vmatmul.mubr.bf16.gmra.mrb[0].mxu0 %v941
        %v1117 = vpop.f32.mrb[0].mxu0
        %v1118 = vadd.f32 0.0, %v1117
        %v1119 = vpop.f32.mrb[0].mxu0
        %v1120 = vpop.f32.mrb[0].mxu0
        %v1121 = vadd.f32 0.0, %v1120
        %v1122 = vpop.f32.mrb[0].mxu0
        %1123 = vmatprep.mubr.bf16.mxu0 %v944
        %1124 = vmatmul.mubr.bf16.gmra.mrb[0].mxu0 %v943
        %v1125 = vpop.f32.mrb[0].mxu0
        %v1126 = vadd.f32 0.0, %v1125
        %v1127 = vpop.f32.mrb[0].mxu0
        %v1128 = vpop.f32.mrb[0].mxu0
        %v1129 = vadd.f32 0.0, %v1128
        %v1130 = vpop.f32.mrb[0].mxu0
        %1131 = vmatprep.mubr.bf16.mxu0 %v946
        %1132 = vmatmul.mubr.bf16.gmra.mrb[0].mxu0 %v945
        %v1133 = vpop.f32.mrb[0].mxu0
        %v1134 = vadd.f32 0.0, %v1133
        %v1135 = vpop.f32.mrb[0].mxu0
        %v1136 = vpop.f32.mrb[0].mxu0
        %v1137 = vadd.f32 0.0, %v1136
        %v1138 = vpop.f32.mrb[0].mxu0
        %1139 = vdwg.mxu0
        %v1140 = vadd.f32 %v755, %v1014
        %v1141 = vadd.f32 %v756, %v1017
        %v1142 = vadd.f32 %v757, %v1022
        %v1143 = vadd.f32 %v758, %v1025
        %v1144 = vadd.f32 %v759, %v1030
        %v1145 = vadd.f32 %v760, %v1033
        %v1146 = vadd.f32 %v761, %v1038
        %v1147 = vadd.f32 %v762, %v1041
        %v1148 = vadd.f32 %v763, %v1046
        %v1149 = vadd.f32 %v764, %v1049
        %v1150 = vadd.f32 %v765, %v1054
        %v1151 = vadd.f32 %v766, %v1057
        %v1152 = vadd.f32 %v767, %v1062
        %v1153 = vadd.f32 %v768, %v1065
        %v1154 = vadd.f32 %v769, %v1070
        %v1155 = vadd.f32 %v770, %v1073
        %v1156 = vadd.f32 %v771, %v1078
        %v1157 = vadd.f32 %v772, %v1081
        %v1158 = vadd.f32 %v773, %v1086
        %v1159 = vadd.f32 %v774, %v1089
        %v1160 = vadd.f32 %v775, %v1094
        %v1161 = vadd.f32 %v776, %v1097
        %v1162 = vadd.f32 %v777, %v1102
        %v1163 = vadd.f32 %v778, %v1105
        %v1164 = vadd.f32 %v779, %v1110
        %v1165 = vadd.f32 %v780, %v1113
        %v1166 = vadd.f32 %v781, %v1118
        %v1167 = vadd.f32 %v782, %v1121
        %v1168 = vadd.f32 %v783, %v1126
        %v1169 = vadd.f32 %v784, %v1129
        %v1170 = vadd.f32 %v785, %v1134
        %v1171 = vadd.f32 %v786, %v1137
        %v1172 = vpack.c.bf16 %v1141, %v1140
        %v1173 = vpack.c.bf16 %v1143, %v1142
        %v1174 = vpack.c.bf16 %v1145, %v1144
        %v1175 = vpack.c.bf16 %v1147, %v1146
        %v1176 = vpack.c.bf16 %v1149, %v1148
        %v1177 = vpack.c.bf16 %v1151, %v1150
        %v1178 = vpack.c.bf16 %v1153, %v1152
        %v1179 = vpack.c.bf16 %v1155, %v1154
        %v1180 = vpack.c.bf16 %v1157, %v1156
        %v1181 = vpack.c.bf16 %v1159, %v1158
        %v1182 = vpack.c.bf16 %v1161, %v1160
        %v1183 = vpack.c.bf16 %v1163, %v1162
        %v1184 = vpack.c.bf16 %v1165, %v1164
        %v1185 = vpack.c.bf16 %v1167, %v1166
        %v1186 = vpack.c.bf16 %v1169, %v1168
        %v1187 = vpack.c.bf16 %v1171, %v1170
        %v1188 = vld [vmem:[%s481] sm:$0xf]
        %v1189 = vld [vmem:[%s481 + $0x4] sm:$0xf]
        %v1190 = vld [vmem:[%s481 + $0x8] sm:$0xf]
        %v1191 = vld [vmem:[%s481 + $0xc] sm:$0xf]
        %v1192 = vld [vmem:[%s481 + $0x10] sm:$0xf]
        %v1193 = vld [vmem:[%s481 + $0x14] sm:$0xf]
        %v1194 = vld [vmem:[%s481 + $0x18] sm:$0xf]
        %v1195 = vld [vmem:[%s481 + $0x1c] sm:$0xf]
        %v1196 = vld [vmem:[%s481 + $0x20] sm:$0xf]
        %v1197 = vld [vmem:[%s481 + $0x24] sm:$0xf]
        %v1198 = vld [vmem:[%s481 + $0x28] sm:$0xf]
        %v1199 = vld [vmem:[%s481 + $0x2c] sm:$0xf]
        %v1200 = vld [vmem:[%s481 + $0x30] sm:$0xf]
        %v1201 = vld [vmem:[%s481 + $0x34] sm:$0xf]
        %v1202 = vld [vmem:[%s481 + $0x38] sm:$0xf]
        %v1203 = vld [vmem:[%s481 + $0x3c] sm:$0xf]
        %v1204 = vld [vmem:[%s551] sm:$0x1]
        %v1206 = vlaneseq
        %v1207 = vshrl.u32 %v1206, 7
        %v1208 = vsub.s32 0, %v1207
        %v1209 = vrot.slane %v1204, %v1208
        %v1227 = vunpack.c.l.b16 %v1188
        %v1228 = vunpack.c.l.b16 %v1189
        %v1229 = vunpack.c.l.b16 %v1190
        %v1230 = vunpack.c.l.b16 %v1191
        %v1231 = vunpack.c.l.b16 %v1192
        %v1232 = vunpack.c.l.b16 %v1193
        %v1233 = vunpack.c.l.b16 %v1194
        %v1234 = vunpack.c.l.b16 %v1195
        %v1235 = vunpack.c.l.b16 %v1196
        %v1236 = vunpack.c.l.b16 %v1197
        %v1237 = vunpack.c.l.b16 %v1198
        %v1238 = vunpack.c.l.b16 %v1199
        %v1239 = vunpack.c.l.b16 %v1200
        %v1240 = vunpack.c.l.b16 %v1201
        %v1241 = vunpack.c.l.b16 %v1202
        %v1242 = vunpack.c.l.b16 %v1203
        %v1243 = vpack.c.b16 %v1228, %v1227
        %v1244 = vpack.c.b16 %v1230, %v1229
        %v1245 = vpack.c.b16 %v1232, %v1231
        %v1246 = vpack.c.b16 %v1234, %v1233
        %v1247 = vpack.c.b16 %v1236, %v1235
        %v1248 = vpack.c.b16 %v1238, %v1237
        %v1249 = vpack.c.b16 %v1240, %v1239
        %v1250 = vpack.c.b16 %v1242, %v1241
        %1259 = vmatprep.subr.bf16.mxu0 0
        %1260 = vmatpush1.bf16.msra.mxu0 %v1243
        %1261 = vmatprep.subr.bf16.mxu0 0
        %1262 = vmatpush1.bf16.msra.mxu0 %v1244
        %1263 = vmatprep.subr.bf16.mxu0 0
        %1264 = vmatpush1.bf16.msra.mxu0 %v1245
        %1265 = vmatprep.subr.bf16.mxu0 0
        %1266 = vmatpush1.bf16.msra.mxu0 %v1246
        %1267 = vmatprep.subr.bf16.mxu0 0
        %1268 = vmatpush1.bf16.msra.mxu0 %v1247
        %1269 = vmatprep.subr.bf16.mxu0 0
        %1270 = vmatpush1.bf16.msra.mxu0 %v1248
        %1271 = vmatprep.subr.bf16.mxu0 0
        %1272 = vmatpush1.bf16.msra.mxu0 %v1249
        %1273 = vmatprep.subr.bf16.mxu0 0
        %1274 = vmatpush1.bf16.msra.mxu0 %v1250
        %1275 = vmatprep.subr.bf16.mxu0 0
        %1276 = vmatpush1.bf16.msra.mxu0 0
        %1277 = vmatprep.subr.bf16.mxu0 0
        %1278 = vmatpush1.bf16.msra.mxu0 0
        %1279 = vmatprep.subr.bf16.mxu0 0
        %1280 = vmatpush1.bf16.msra.mxu0 0
        %1281 = vmatprep.subr.bf16.mxu0 0
        %1282 = vmatpush1.bf16.msra.mxu0 0
        %1283 = vmatprep.subr.bf16.mxu0 0
        %1284 = vmatpush1.bf16.msra.mxu0 0
        %1285 = vmatprep.subr.bf16.mxu0 0
        %1286 = vmatpush1.bf16.msra.mxu0 0
        %1287 = vmatprep.subr.bf16.mxu0 0
        %1288 = vmatpush1.bf16.msra.mxu0 0
        %1289 = vmatprep.subr.bf16.mxu0 0
        %1290 = vmatpush1.bf16.msra.mxu0 0
        %1291 = vmatprep.mubr.bf16.mxu0 0
        %1292 = vmatmul.mubr.bf16.gmra.mrb[0].mxu0 %v1172
        %v1293 = vpop.f32.mrb[0].mxu0
        %v1294 = vadd.f32 %v1209, %v1293
        %v1295 = vpop.f32.mrb[0].mxu0
        %v1296 = vpop.f32.mrb[0].mxu0
        %v1297 = vadd.f32 %v1209, %v1296
        %v1298 = vpop.f32.mrb[0].mxu0
        %1299 = vmatprep.mubr.bf16.mxu0 0
        %1300 = vmatmul.mubr.bf16.gmra.mrb[0].mxu0 %v1173
        %v1301 = vpop.f32.mrb[0].mxu0
        %v1302 = vadd.f32 %v1209, %v1301
        %v1303 = vpop.f32.mrb[0].mxu0
        %v1304 = vpop.f32.mrb[0].mxu0
        %v1305 = vadd.f32 %v1209, %v1304
        %v1306 = vpop.f32.mrb[0].mxu0
        %1307 = vmatprep.mubr.bf16.mxu0 0
        %1308 = vmatmul.mubr.bf16.gmra.mrb[0].mxu0 %v1174
        %v1309 = vpop.f32.mrb[0].mxu0
        %v1310 = vadd.f32 %v1209, %v1309
        %v1311 = vpop.f32.mrb[0].mxu0
        %v1312 = vpop.f32.mrb[0].mxu0
        %v1313 = vadd.f32 %v1209, %v1312
        %v1314 = vpop.f32.mrb[0].mxu0
        %1315 = vmatprep.mubr.bf16.mxu0 0
        %1316 = vmatmul.mubr.bf16.gmra.mrb[0].mxu0 %v1175
        %v1317 = vpop.f32.mrb[0].mxu0
        %v1318 = vadd.f32 %v1209, %v1317
        %v1319 = vpop.f32.mrb[0].mxu0
        %v1320 = vpop.f32.mrb[0].mxu0
        %v1321 = vadd.f32 %v1209, %v1320
        %v1322 = vpop.f32.mrb[0].mxu0
        %1323 = vmatprep.mubr.bf16.mxu0 0
        %1324 = vmatmul.mubr.bf16.gmra.mrb[0].mxu0 %v1176
        %v1325 = vpop.f32.mrb[0].mxu0
        %v1326 = vadd.f32 %v1209, %v1325
        %v1327 = vpop.f32.mrb[0].mxu0
        %v1328 = vpop.f32.mrb[0].mxu0
        %v1329 = vadd.f32 %v1209, %v1328
        %v1330 = vpop.f32.mrb[0].mxu0
        %1331 = vmatprep.mubr.bf16.mxu0 0
        %1332 = vmatmul.mubr.bf16.gmra.mrb[0].mxu0 %v1177
        %v1333 = vpop.f32.mrb[0].mxu0
        %v1334 = vadd.f32 %v1209, %v1333
        %v1335 = vpop.f32.mrb[0].mxu0
        %v1336 = vpop.f32.mrb[0].mxu0
        %v1337 = vadd.f32 %v1209, %v1336
        %v1338 = vpop.f32.mrb[0].mxu0
        %1339 = vmatprep.mubr.bf16.mxu0 0
        %1340 = vmatmul.mubr.bf16.gmra.mrb[0].mxu0 %v1178
        %v1341 = vpop.f32.mrb[0].mxu0
        %v1342 = vadd.f32 %v1209, %v1341
        %v1343 = vpop.f32.mrb[0].mxu0
        %v1344 = vpop.f32.mrb[0].mxu0
        %v1345 = vadd.f32 %v1209, %v1344
        %v1346 = vpop.f32.mrb[0].mxu0
        %1347 = vmatprep.mubr.bf16.mxu0 0
        %1348 = vmatmul.mubr.bf16.gmra.mrb[0].mxu0 %v1179
        %v1349 = vpop.f32.mrb[0].mxu0
        %v1350 = vadd.f32 %v1209, %v1349
        %v1351 = vpop.f32.mrb[0].mxu0
        %v1352 = vpop.f32.mrb[0].mxu0
        %v1353 = vadd.f32 %v1209, %v1352
        %v1354 = vpop.f32.mrb[0].mxu0
        %1355 = vmatprep.mubr.bf16.mxu0 0
        %1356 = vmatmul.mubr.bf16.gmra.mrb[0].mxu0 %v1180
        %v1357 = vpop.f32.mrb[0].mxu0
        %v1358 = vadd.f32 %v1209, %v1357
        %v1359 = vpop.f32.mrb[0].mxu0
        %v1360 = vpop.f32.mrb[0].mxu0
        %v1361 = vadd.f32 %v1209, %v1360
        %v1362 = vpop.f32.mrb[0].mxu0
        %1363 = vmatprep.mubr.bf16.mxu0 0
        %1364 = vmatmul.mubr.bf16.gmra.mrb[0].mxu0 %v1181
        %v1365 = vpop.f32.mrb[0].mxu0
        %v1366 = vadd.f32 %v1209, %v1365
        %v1367 = vpop.f32.mrb[0].mxu0
        %v1368 = vpop.f32.mrb[0].mxu0
        %v1369 = vadd.f32 %v1209, %v1368
        %v1370 = vpop.f32.mrb[0].mxu0
        %1371 = vmatprep.mubr.bf16.mxu0 0
        %1372 = vmatmul.mubr.bf16.gmra.mrb[0].mxu0 %v1182
        %v1373 = vpop.f32.mrb[0].mxu0
        %v1374 = vadd.f32 %v1209, %v1373
        %v1375 = vpop.f32.mrb[0].mxu0
        %v1376 = vpop.f32.mrb[0].mxu0
        %v1377 = vadd.f32 %v1209, %v1376
        %v1378 = vpop.f32.mrb[0].mxu0
        %1379 = vmatprep.mubr.bf16.mxu0 0
        %1380 = vmatmul.mubr.bf16.gmra.mrb[0].mxu0 %v1183
        %v1381 = vpop.f32.mrb[0].mxu0
        %v1382 = vadd.f32 %v1209, %v1381
        %v1383 = vpop.f32.mrb[0].mxu0
        %v1384 = vpop.f32.mrb[0].mxu0
        %v1385 = vadd.f32 %v1209, %v1384
        %v1386 = vpop.f32.mrb[0].mxu0
        %1387 = vmatprep.mubr.bf16.mxu0 0
        %1388 = vmatmul.mubr.bf16.gmra.mrb[0].mxu0 %v1184
        %v1389 = vpop.f32.mrb[0].mxu0
        %v1390 = vadd.f32 %v1209, %v1389
        %v1391 = vpop.f32.mrb[0].mxu0
        %v1392 = vpop.f32.mrb[0].mxu0
        %v1393 = vadd.f32 %v1209, %v1392
        %v1394 = vpop.f32.mrb[0].mxu0
        %1395 = vmatprep.mubr.bf16.mxu0 0
        %1396 = vmatmul.mubr.bf16.gmra.mrb[0].mxu0 %v1185
        %v1397 = vpop.f32.mrb[0].mxu0
        %v1398 = vadd.f32 %v1209, %v1397
        %v1399 = vpop.f32.mrb[0].mxu0
        %v1400 = vpop.f32.mrb[0].mxu0
        %v1401 = vadd.f32 %v1209, %v1400
        %v1402 = vpop.f32.mrb[0].mxu0
        %1403 = vmatprep.mubr.bf16.mxu0 0
        %1404 = vmatmul.mubr.bf16.gmra.mrb[0].mxu0 %v1186
        %v1405 = vpop.f32.mrb[0].mxu0
        %v1406 = vadd.f32 %v1209, %v1405
        %v1407 = vpop.f32.mrb[0].mxu0
        %v1408 = vpop.f32.mrb[0].mxu0
        %v1409 = vadd.f32 %v1209, %v1408
        %v1410 = vpop.f32.mrb[0].mxu0
        %1411 = vmatprep.mubr.bf16.mxu0 0
        %1412 = vmatmul.mubr.bf16.gmra.mrb[0].mxu0 %v1187
        %v1413 = vpop.f32.mrb[0].mxu0
        %v1414 = vadd.f32 %v1209, %v1413
        %v1415 = vpop.f32.mrb[0].mxu0
        %v1416 = vpop.f32.mrb[0].mxu0
        %v1417 = vadd.f32 %v1209, %v1416
        %v1418 = vpop.f32.mrb[0].mxu0
        %1419 = vdwg.mxu0
        %v1420 = vmax.f32 %v1294, 0.0
        %v1421 = vmax.f32 %v1297, 0.0
        %v1422 = vmax.f32 %v1302, 0.0
        %v1423 = vmax.f32 %v1305, 0.0
        %v1424 = vmax.f32 %v1310, 0.0
        %v1425 = vmax.f32 %v1313, 0.0
        %v1426 = vmax.f32 %v1318, 0.0
        %v1427 = vmax.f32 %v1321, 0.0
        %v1428 = vmax.f32 %v1326, 0.0
        %v1429 = vmax.f32 %v1329, 0.0
        %v1430 = vmax.f32 %v1334, 0.0
        %v1431 = vmax.f32 %v1337, 0.0
        %v1432 = vmax.f32 %v1342, 0.0
        %v1433 = vmax.f32 %v1345, 0.0
        %v1434 = vmax.f32 %v1350, 0.0
        %v1435 = vmax.f32 %v1353, 0.0
        %v1436 = vmax.f32 %v1358, 0.0
        %v1437 = vmax.f32 %v1361, 0.0
        %v1438 = vmax.f32 %v1366, 0.0
        %v1439 = vmax.f32 %v1369, 0.0
        %v1440 = vmax.f32 %v1374, 0.0
        %v1441 = vmax.f32 %v1377, 0.0
        %v1442 = vmax.f32 %v1382, 0.0
        %v1443 = vmax.f32 %v1385, 0.0
        %v1444 = vmax.f32 %v1390, 0.0
        %v1445 = vmax.f32 %v1393, 0.0
        %v1446 = vmax.f32 %v1398, 0.0
        %v1447 = vmax.f32 %v1401, 0.0
        %v1448 = vmax.f32 %v1406, 0.0
        %v1449 = vmax.f32 %v1409, 0.0
        %v1450 = vmax.f32 %v1414, 0.0
        %v1451 = vmax.f32 %v1417, 0.0
        %v1452 = vpack.c.bf16 %v1421, %v1420
        %v1453 = vpack.c.bf16 %v1423, %v1422
        %v1454 = vpack.c.bf16 %v1425, %v1424
        %v1455 = vpack.c.bf16 %v1427, %v1426
        %v1456 = vpack.c.bf16 %v1429, %v1428
        %v1457 = vpack.c.bf16 %v1431, %v1430
        %v1458 = vpack.c.bf16 %v1433, %v1432
        %v1459 = vpack.c.bf16 %v1435, %v1434
        %v1460 = vpack.c.bf16 %v1437, %v1436
        %v1461 = vpack.c.bf16 %v1439, %v1438
        %v1462 = vpack.c.bf16 %v1441, %v1440
        %v1463 = vpack.c.bf16 %v1443, %v1442
        %v1464 = vpack.c.bf16 %v1445, %v1444
        %v1465 = vpack.c.bf16 %v1447, %v1446
        %v1466 = vpack.c.bf16 %v1449, %v1448
        %v1467 = vpack.c.bf16 %v1451, %v1450
        %v1468 = vld [vmem:[%s490] sm:$0xf]
        %v1469 = vld [vmem:[%s490 + $0x4] sm:$0xf]
        %v1470 = vld [vmem:[%s490 + $0x8] sm:$0xf]
        %v1471 = vld [vmem:[%s490 + $0xc] sm:$0xf]
        %v1472 = vld [vmem:[%s490 + $0x10] sm:$0xf]
        %v1473 = vld [vmem:[%s490 + $0x14] sm:$0xf]
        %v1474 = vld [vmem:[%s490 + $0x18] sm:$0xf]
        %v1475 = vld [vmem:[%s490 + $0x1c] sm:$0xf]
        %v1476 = vld [vmem:[%s490 + $0x20] sm:$0xf]
        %v1477 = vld [vmem:[%s490 + $0x24] sm:$0xf]
        %v1478 = vld [vmem:[%s490 + $0x28] sm:$0xf]
        %v1479 = vld [vmem:[%s490 + $0x2c] sm:$0xf]
        %v1480 = vld [vmem:[%s490 + $0x30] sm:$0xf]
        %v1481 = vld [vmem:[%s490 + $0x34] sm:$0xf]
        %v1482 = vld [vmem:[%s490 + $0x38] sm:$0xf]
        %v1483 = vld [vmem:[%s490 + $0x3c] sm:$0xf]
        %v1484 = vld [vmem:[%s554] sm:$0x1]
        %v1486 = vlaneseq
        %v1487 = vshrl.u32 %v1486, 7
        %v1488 = vsub.s32 0, %v1487
        %v1489 = vrot.slane %v1484, %v1488
        %v1507 = vunpack.c.l.b16 %v1468
        %v1508 = vunpack.c.l.b16 %v1469
        %v1509 = vunpack.c.l.b16 %v1470
        %v1510 = vunpack.c.l.b16 %v1471
        %v1511 = vunpack.c.l.b16 %v1472
        %v1512 = vunpack.c.l.b16 %v1473
        %v1513 = vunpack.c.l.b16 %v1474
        %v1514 = vunpack.c.l.b16 %v1475
        %v1515 = vunpack.c.l.b16 %v1476
        %v1516 = vunpack.c.l.b16 %v1477
        %v1517 = vunpack.c.l.b16 %v1478
        %v1518 = vunpack.c.l.b16 %v1479
        %v1519 = vunpack.c.l.b16 %v1480
        %v1520 = vunpack.c.l.b16 %v1481
        %v1521 = vunpack.c.l.b16 %v1482
        %v1522 = vunpack.c.l.b16 %v1483
        %v1523 = vpack.c.b16 %v1508, %v1507
        %v1524 = vpack.c.b16 %v1510, %v1509
        %v1525 = vpack.c.b16 %v1512, %v1511
        %v1526 = vpack.c.b16 %v1514, %v1513
        %v1527 = vpack.c.b16 %v1516, %v1515
        %v1528 = vpack.c.b16 %v1518, %v1517
        %v1529 = vpack.c.b16 %v1520, %v1519
        %v1530 = vpack.c.b16 %v1522, %v1521
        %1539 = vmatprep.subr.bf16.mxu0 0
        %1540 = vmatpush1.bf16.msra.mxu0 %v1523
        %1541 = vmatprep.subr.bf16.mxu0 0
        %1542 = vmatpush1.bf16.msra.mxu0 %v1524
        %1543 = vmatprep.subr.bf16.mxu0 0
        %1544 = vmatpush1.bf16.msra.mxu0 %v1525
        %1545 = vmatprep.subr.bf16.mxu0 0
        %1546 = vmatpush1.bf16.msra.mxu0 %v1526
        %1547 = vmatprep.subr.bf16.mxu0 0
        %1548 = vmatpush1.bf16.msra.mxu0 %v1527
        %1549 = vmatprep.subr.bf16.mxu0 0
        %1550 = vmatpush1.bf16.msra.mxu0 %v1528
        %1551 = vmatprep.subr.bf16.mxu0 0
        %1552 = vmatpush1.bf16.msra.mxu0 %v1529
        %1553 = vmatprep.subr.bf16.mxu0 0
        %1554 = vmatpush1.bf16.msra.mxu0 %v1530
        %1555 = vmatprep.subr.bf16.mxu0 0
        %1556 = vmatpush1.bf16.msra.mxu0 0
        %1557 = vmatprep.subr.bf16.mxu0 0
        %1558 = vmatpush1.bf16.msra.mxu0 0
        %1559 = vmatprep.subr.bf16.mxu0 0
        %1560 = vmatpush1.bf16.msra.mxu0 0
        %1561 = vmatprep.subr.bf16.mxu0 0
        %1562 = vmatpush1.bf16.msra.mxu0 0
        %1563 = vmatprep.subr.bf16.mxu0 0
        %1564 = vmatpush1.bf16.msra.mxu0 0
        %1565 = vmatprep.subr.bf16.mxu0 0
        %1566 = vmatpush1.bf16.msra.mxu0 0
        %1567 = vmatprep.subr.bf16.mxu0 0
        %1568 = vmatpush1.bf16.msra.mxu0 0
        %1569 = vmatprep.subr.bf16.mxu0 0
        %1570 = vmatpush1.bf16.msra.mxu0 0
        %1571 = vmatprep.mubr.bf16.mxu0 0
        %1572 = vmatmul.mubr.bf16.gmra.mrb[0].mxu0 %v1452
        %v1573 = vpop.f32.mrb[0].mxu0
        %v1574 = vadd.f32 %v1489, %v1573
        %v1575 = vpop.f32.mrb[0].mxu0
        %v1576 = vpop.f32.mrb[0].mxu0
        %v1577 = vadd.f32 %v1489, %v1576
        %v1578 = vpop.f32.mrb[0].mxu0
        %1579 = vmatprep.mubr.bf16.mxu0 0
        %1580 = vmatmul.mubr.bf16.gmra.mrb[0].mxu0 %v1453
        %v1581 = vpop.f32.mrb[0].mxu0
        %v1582 = vadd.f32 %v1489, %v1581
        %v1583 = vpop.f32.mrb[0].mxu0
        %v1584 = vpop.f32.mrb[0].mxu0
        %v1585 = vadd.f32 %v1489, %v1584
        %v1586 = vpop.f32.mrb[0].mxu0
        %1587 = vmatprep.mubr.bf16.mxu0 0
        %1588 = vmatmul.mubr.bf16.gmra.mrb[0].mxu0 %v1454
        %v1589 = vpop.f32.mrb[0].mxu0
        %v1590 = vadd.f32 %v1489, %v1589
        %v1591 = vpop.f32.mrb[0].mxu0
        %v1592 = vpop.f32.mrb[0].mxu0
        %v1593 = vadd.f32 %v1489, %v1592
        %v1594 = vpop.f32.mrb[0].mxu0
        %1595 = vmatprep.mubr.bf16.mxu0 0
        %1596 = vmatmul.mubr.bf16.gmra.mrb[0].mxu0 %v1455
        %v1597 = vpop.f32.mrb[0].mxu0
        %v1598 = vadd.f32 %v1489, %v1597
        %v1599 = vpop.f32.mrb[0].mxu0
        %v1600 = vpop.f32.mrb[0].mxu0
        %v1601 = vadd.f32 %v1489, %v1600
        %v1602 = vpop.f32.mrb[0].mxu0
        %1603 = vmatprep.mubr.bf16.mxu0 0
        %1604 = vmatmul.mubr.bf16.gmra.mrb[0].mxu0 %v1456
        %v1605 = vpop.f32.mrb[0].mxu0
        %v1606 = vadd.f32 %v1489, %v1605
        %v1607 = vpop.f32.mrb[0].mxu0
        %v1608 = vpop.f32.mrb[0].mxu0
        %v1609 = vadd.f32 %v1489, %v1608
        %v1610 = vpop.f32.mrb[0].mxu0
        %1611 = vmatprep.mubr.bf16.mxu0 0
        %1612 = vmatmul.mubr.bf16.gmra.mrb[0].mxu0 %v1457
        %v1613 = vpop.f32.mrb[0].mxu0
        %v1614 = vadd.f32 %v1489, %v1613
        %v1615 = vpop.f32.mrb[0].mxu0
        %v1616 = vpop.f32.mrb[0].mxu0
        %v1617 = vadd.f32 %v1489, %v1616
        %v1618 = vpop.f32.mrb[0].mxu0
        %1619 = vmatprep.mubr.bf16.mxu0 0
        %1620 = vmatmul.mubr.bf16.gmra.mrb[0].mxu0 %v1458
        %v1621 = vpop.f32.mrb[0].mxu0
        %v1622 = vadd.f32 %v1489, %v1621
        %v1623 = vpop.f32.mrb[0].mxu0
        %v1624 = vpop.f32.mrb[0].mxu0
        %v1625 = vadd.f32 %v1489, %v1624
        %v1626 = vpop.f32.mrb[0].mxu0
        %1627 = vmatprep.mubr.bf16.mxu0 0
        %1628 = vmatmul.mubr.bf16.gmra.mrb[0].mxu0 %v1459
        %v1629 = vpop.f32.mrb[0].mxu0
        %v1630 = vadd.f32 %v1489, %v1629
        %v1631 = vpop.f32.mrb[0].mxu0
        %v1632 = vpop.f32.mrb[0].mxu0
        %v1633 = vadd.f32 %v1489, %v1632
        %v1634 = vpop.f32.mrb[0].mxu0
        %1635 = vmatprep.mubr.bf16.mxu0 0
        %1636 = vmatmul.mubr.bf16.gmra.mrb[0].mxu0 %v1460
        %v1637 = vpop.f32.mrb[0].mxu0
        %v1638 = vadd.f32 %v1489, %v1637
        %v1639 = vpop.f32.mrb[0].mxu0
        %v1640 = vpop.f32.mrb[0].mxu0
        %v1641 = vadd.f32 %v1489, %v1640
        %v1642 = vpop.f32.mrb[0].mxu0
        %1643 = vmatprep.mubr.bf16.mxu0 0
        %1644 = vmatmul.mubr.bf16.gmra.mrb[0].mxu0 %v1461
        %v1645 = vpop.f32.mrb[0].mxu0
        %v1646 = vadd.f32 %v1489, %v1645
        %v1647 = vpop.f32.mrb[0].mxu0
        %v1648 = vpop.f32.mrb[0].mxu0
        %v1649 = vadd.f32 %v1489, %v1648
        %v1650 = vpop.f32.mrb[0].mxu0
        %1651 = vmatprep.mubr.bf16.mxu0 0
        %1652 = vmatmul.mubr.bf16.gmra.mrb[0].mxu0 %v1462
        %v1653 = vpop.f32.mrb[0].mxu0
        %v1654 = vadd.f32 %v1489, %v1653
        %v1655 = vpop.f32.mrb[0].mxu0
        %v1656 = vpop.f32.mrb[0].mxu0
        %v1657 = vadd.f32 %v1489, %v1656
        %v1658 = vpop.f32.mrb[0].mxu0
        %1659 = vmatprep.mubr.bf16.mxu0 0
        %1660 = vmatmul.mubr.bf16.gmra.mrb[0].mxu0 %v1463
        %v1661 = vpop.f32.mrb[0].mxu0
        %v1662 = vadd.f32 %v1489, %v1661
        %v1663 = vpop.f32.mrb[0].mxu0
        %v1664 = vpop.f32.mrb[0].mxu0
        %v1665 = vadd.f32 %v1489, %v1664
        %v1666 = vpop.f32.mrb[0].mxu0
        %1667 = vmatprep.mubr.bf16.mxu0 0
        %1668 = vmatmul.mubr.bf16.gmra.mrb[0].mxu0 %v1464
        %v1669 = vpop.f32.mrb[0].mxu0
        %v1670 = vadd.f32 %v1489, %v1669
        %v1671 = vpop.f32.mrb[0].mxu0
        %v1672 = vpop.f32.mrb[0].mxu0
        %v1673 = vadd.f32 %v1489, %v1672
        %v1674 = vpop.f32.mrb[0].mxu0
        %1675 = vmatprep.mubr.bf16.mxu0 0
        %1676 = vmatmul.mubr.bf16.gmra.mrb[0].mxu0 %v1465
        %v1677 = vpop.f32.mrb[0].mxu0
        %v1678 = vadd.f32 %v1489, %v1677
        %v1679 = vpop.f32.mrb[0].mxu0
        %v1680 = vpop.f32.mrb[0].mxu0
        %v1681 = vadd.f32 %v1489, %v1680
        %v1682 = vpop.f32.mrb[0].mxu0
        %1683 = vmatprep.mubr.bf16.mxu0 0
        %1684 = vmatmul.mubr.bf16.gmra.mrb[0].mxu0 %v1466
        %v1685 = vpop.f32.mrb[0].mxu0
        %v1686 = vadd.f32 %v1489, %v1685
        %v1687 = vpop.f32.mrb[0].mxu0
        %v1688 = vpop.f32.mrb[0].mxu0
        %v1689 = vadd.f32 %v1489, %v1688
        %v1690 = vpop.f32.mrb[0].mxu0
        %1691 = vmatprep.mubr.bf16.mxu0 0
        %1692 = vmatmul.mubr.bf16.gmra.mrb[0].mxu0 %v1467
        %v1693 = vpop.f32.mrb[0].mxu0
        %v1694 = vadd.f32 %v1489, %v1693
        %v1695 = vpop.f32.mrb[0].mxu0
        %v1696 = vpop.f32.mrb[0].mxu0
        %v1697 = vadd.f32 %v1489, %v1696
        %v1698 = vpop.f32.mrb[0].mxu0
        %1699 = vdwg.mxu0
        %v1700 = vmax.f32 %v1574, 0.0
        %v1701 = vmax.f32 %v1577, 0.0
        %v1702 = vmax.f32 %v1582, 0.0
        %v1703 = vmax.f32 %v1585, 0.0
        %v1704 = vmax.f32 %v1590, 0.0
        %v1705 = vmax.f32 %v1593, 0.0
        %v1706 = vmax.f32 %v1598, 0.0
        %v1707 = vmax.f32 %v1601, 0.0
        %v1708 = vmax.f32 %v1606, 0.0
        %v1709 = vmax.f32 %v1609, 0.0
        %v1710 = vmax.f32 %v1614, 0.0
        %v1711 = vmax.f32 %v1617, 0.0
        %v1712 = vmax.f32 %v1622, 0.0
        %v1713 = vmax.f32 %v1625, 0.0
        %v1714 = vmax.f32 %v1630, 0.0
        %v1715 = vmax.f32 %v1633, 0.0
        %v1716 = vmax.f32 %v1638, 0.0
        %v1717 = vmax.f32 %v1641, 0.0
        %v1718 = vmax.f32 %v1646, 0.0
        %v1719 = vmax.f32 %v1649, 0.0
        %v1720 = vmax.f32 %v1654, 0.0
        %v1721 = vmax.f32 %v1657, 0.0
        %v1722 = vmax.f32 %v1662, 0.0
        %v1723 = vmax.f32 %v1665, 0.0
        %v1724 = vmax.f32 %v1670, 0.0
        %v1725 = vmax.f32 %v1673, 0.0
        %v1726 = vmax.f32 %v1678, 0.0
        %v1727 = vmax.f32 %v1681, 0.0
        %v1728 = vmax.f32 %v1686, 0.0
        %v1729 = vmax.f32 %v1689, 0.0
        %v1730 = vmax.f32 %v1694, 0.0
        %v1731 = vmax.f32 %v1697, 0.0
        %v1732 = vpack.c.bf16 %v1701, %v1700
        %v1733 = vpack.c.bf16 %v1703, %v1702
        %v1734 = vpack.c.bf16 %v1705, %v1704
        %v1735 = vpack.c.bf16 %v1707, %v1706
        %v1736 = vpack.c.bf16 %v1709, %v1708
        %v1737 = vpack.c.bf16 %v1711, %v1710
        %v1738 = vpack.c.bf16 %v1713, %v1712
        %v1739 = vpack.c.bf16 %v1715, %v1714
        %v1740 = vpack.c.bf16 %v1717, %v1716
        %v1741 = vpack.c.bf16 %v1719, %v1718
        %v1742 = vpack.c.bf16 %v1721, %v1720
        %v1743 = vpack.c.bf16 %v1723, %v1722
        %v1744 = vpack.c.bf16 %v1725, %v1724
        %v1745 = vpack.c.bf16 %v1727, %v1726
        %v1746 = vpack.c.bf16 %v1729, %v1728
        %v1747 = vpack.c.bf16 %v1731, %v1730
        %1748 = vst [vmem:[#allocation2] sm:$0xff] %v1732
        %1749 = vst [vmem:[#allocation2 + $0x8] sm:$0xff] %v1733
        %1750 = vst [vmem:[#allocation2 + $0x10] sm:$0xff] %v1734
        %1751 = vst [vmem:[#allocation2 + $0x18] sm:$0xff] %v1735
        %1752 = vst [vmem:[#allocation2 + $0x20] sm:$0xff] %v1736
        %1753 = vst [vmem:[#allocation2 + $0x28] sm:$0xff] %v1737
        %1754 = vst [vmem:[#allocation2 + $0x30] sm:$0xff] %v1738
        %1755 = vst [vmem:[#allocation2 + $0x38] sm:$0xff] %v1739
        %1756 = vst [vmem:[#allocation2 + $0x40] sm:$0xff] %v1740
        %1757 = vst [vmem:[#allocation2 + $0x48] sm:$0xff] %v1741
        %1758 = vst [vmem:[#allocation2 + $0x50] sm:$0xff] %v1742
        %1759 = vst [vmem:[#allocation2 + $0x58] sm:$0xff] %v1743
        %1760 = vst [vmem:[#allocation2 + $0x60] sm:$0xff] %v1744
        %1761 = vst [vmem:[#allocation2 + $0x68] sm:$0xff] %v1745
        %1762 = vst [vmem:[#allocation2 + $0x70] sm:$0xff] %v1746
        %1763 = vst [vmem:[#allocation2 + $0x78] sm:$0xff] %v1747
        %p1764 = scmp.eq.s32.totalorder %s31, 1
        // Predicated region
        $region97: #{gin_neighsampler_forward.1} parent=63 // pred_check
          %p1765 = pneg %p1764
        $region98: #{gin_neighsampler_forward.1} parent=63 // pred_check_branch
          %1767 = sbr.rel (%p1765) target = $region100
        $region99: #{gin_neighsampler_forward.1} parent=63 // pred_region
          %v1768 = vld [vmem:[#allocation2] sm:$0xff]
          %v1769 = vld [vmem:[#allocation2 + $0x8] sm:$0xff]
          %v1770 = vld [vmem:[#allocation2 + $0x10] sm:$0xff]
          %v1771 = vld [vmem:[#allocation2 + $0x18] sm:$0xff]
          %v1772 = vld [vmem:[#allocation2 + $0x20] sm:$0xff]
          %v1773 = vld [vmem:[#allocation2 + $0x28] sm:$0xff]
          %v1774 = vld [vmem:[#allocation2 + $0x30] sm:$0xff]
          %v1775 = vld [vmem:[#allocation2 + $0x38] sm:$0xff]
          %v1776 = vld [vmem:[#allocation2 + $0x40] sm:$0xff]
          %v1777 = vld [vmem:[#allocation2 + $0x48] sm:$0xff]
          %v1778 = vld [vmem:[#allocation2 + $0x50] sm:$0xff]
          %v1779 = vld [vmem:[#allocation2 + $0x58] sm:$0xff]
          %v1780 = vld [vmem:[#allocation12] sm:$0xf]
          %v1781 = vld [vmem:[#allocation12 + $0x4] sm:$0xf]
          %v1782 = vld [vmem:[#allocation12 + $0x8] sm:$0xf]
          %v1783 = vld [vmem:[#allocation12 + $0xc] sm:$0xf]
          %v1784 = vld [vmem:[#allocation12 + $0x10] sm:$0xf]
          %v1785 = vld [vmem:[#allocation12 + $0x14] sm:$0xf]
          %v1786 = vld [vmem:[#allocation12 + $0x18] sm:$0xf]
          %v1787 = vld [vmem:[#allocation12 + $0x1c] sm:$0xf]
          %v1788 = vld [vmem:[#allocation12 + $0x20] sm:$0xf]
          %v1789 = vld [vmem:[#allocation12 + $0x24] sm:$0xf]
          %v1790 = vld [vmem:[#allocation12 + $0x28] sm:$0xf]
          %v1791 = vld [vmem:[#allocation12 + $0x2c] sm:$0xf]
          %v1792 = vld [vmem:[#allocation12 + $0x30] sm:$0xf]
          %v1793 = vld [vmem:[#allocation12 + $0x34] sm:$0xf]
          %v1794 = vld [vmem:[#allocation12 + $0x38] sm:$0xf]
          %v1795 = vld [vmem:[#allocation12 + $0x3c] sm:$0xf]
          %v1796 = vld [vmem:[%s8] sm:$0x1]
          %v1798 = vlaneseq
          %v1799 = vshrl.u32 %v1798, 7
          %v1800 = vsub.s32 0, %v1799
          %v1801 = vrot.slane %v1796, %v1800
          %v1819 = vunpack.c.l.b16 %v1780
          %v1820 = vunpack.c.l.b16 %v1781
          %v1821 = vunpack.c.l.b16 %v1782
          %v1822 = vunpack.c.l.b16 %v1783
          %v1823 = vunpack.c.l.b16 %v1784
          %v1824 = vunpack.c.l.b16 %v1785
          %v1825 = vunpack.c.l.b16 %v1786
          %v1826 = vunpack.c.l.b16 %v1787
          %v1827 = vunpack.c.l.b16 %v1788
          %v1828 = vunpack.c.l.b16 %v1789
          %v1829 = vunpack.c.l.b16 %v1790
          %v1830 = vunpack.c.l.b16 %v1791
          %v1831 = vunpack.c.l.b16 %v1792
          %v1832 = vunpack.c.l.b16 %v1793
          %v1833 = vunpack.c.l.b16 %v1794
          %v1834 = vunpack.c.l.b16 %v1795
          %v1835 = vpack.c.b16 %v1820, %v1819
          %v1836 = vpack.c.b16 %v1822, %v1821
          %v1837 = vpack.c.b16 %v1824, %v1823
          %v1838 = vpack.c.b16 %v1826, %v1825
          %v1839 = vpack.c.b16 %v1828, %v1827
          %v1840 = vpack.c.b16 %v1830, %v1829
          %v1841 = vpack.c.b16 %v1832, %v1831
          %v1842 = vpack.c.b16 %v1834, %v1833
          %1851 = vmatprep.subr.bf16.mxu0 0
          %1852 = vmatpush1.bf16.msra.mxu0 %v1835
          %1853 = vmatprep.subr.bf16.mxu0 0
          %1854 = vmatpush1.bf16.msra.mxu0 %v1836
          %1855 = vmatprep.subr.bf16.mxu0 0
          %1856 = vmatpush1.bf16.msra.mxu0 %v1837
          %1857 = vmatprep.subr.bf16.mxu0 0
          %1858 = vmatpush1.bf16.msra.mxu0 %v1838
          %1859 = vmatprep.subr.bf16.mxu0 0
          %1860 = vmatpush1.bf16.msra.mxu0 %v1839
          %1861 = vmatprep.subr.bf16.mxu0 0
          %1862 = vmatpush1.bf16.msra.mxu0 %v1840
          %1863 = vmatprep.subr.bf16.mxu0 0
          %1864 = vmatpush1.bf16.msra.mxu0 %v1841
          %1865 = vmatprep.subr.bf16.mxu0 0
          %1866 = vmatpush1.bf16.msra.mxu0 %v1842
          %1867 = vmatprep.subr.bf16.mxu0 0
          %1868 = vmatpush1.bf16.msra.mxu0 0
          %1869 = vmatprep.subr.bf16.mxu0 0
          %1870 = vmatpush1.bf16.msra.mxu0 0
          %1871 = vmatprep.subr.bf16.mxu0 0
          %1872 = vmatpush1.bf16.msra.mxu0 0
          %1873 = vmatprep.subr.bf16.mxu0 0
          %1874 = vmatpush1.bf16.msra.mxu0 0
          %1875 = vmatprep.subr.bf16.mxu0 0
          %1876 = vmatpush1.bf16.msra.mxu0 0
          %1877 = vmatprep.subr.bf16.mxu0 0
          %1878 = vmatpush1.bf16.msra.mxu0 0
          %1879 = vmatprep.subr.bf16.mxu0 0
          %1880 = vmatpush1.bf16.msra.mxu0 0
          %1881 = vmatprep.subr.bf16.mxu0 0
          %1882 = vmatpush1.bf16.msra.mxu0 0
          %1883 = vmatprep.mubr.bf16.mxu0 0
          %1884 = vmatmul.mubr.bf16.gmra.mrb[0].mxu0 %v1768
          %v1885 = vpop.f32.mrb[0].mxu0
          %v1886 = vadd.f32 %v1801, %v1885
          %v1887 = vpop.f32.mrb[0].mxu0
          %v1888 = vpop.f32.mrb[0].mxu0
          %v1889 = vadd.f32 %v1801, %v1888
          %v1890 = vpop.f32.mrb[0].mxu0
          %1891 = vmatprep.mubr.bf16.mxu0 0
          %1892 = vmatmul.mubr.bf16.gmra.mrb[0].mxu0 %v1769
          %v1893 = vpop.f32.mrb[0].mxu0
          %v1894 = vadd.f32 %v1801, %v1893
          %v1895 = vpop.f32.mrb[0].mxu0
          %v1896 = vpop.f32.mrb[0].mxu0
          %v1897 = vadd.f32 %v1801, %v1896
          %v1898 = vpop.f32.mrb[0].mxu0
          %1899 = vmatprep.mubr.bf16.mxu0 0
          %1900 = vmatmul.mubr.bf16.gmra.mrb[0].mxu0 %v1770
          %v1901 = vpop.f32.mrb[0].mxu0
          %v1902 = vadd.f32 %v1801, %v1901
          %v1903 = vpop.f32.mrb[0].mxu0
          %v1904 = vpop.f32.mrb[0].mxu0
          %v1905 = vadd.f32 %v1801, %v1904
          %v1906 = vpop.f32.mrb[0].mxu0
          %1907 = vmatprep.mubr.bf16.mxu0 0
          %1908 = vmatmul.mubr.bf16.gmra.mrb[0].mxu0 %v1771
          %v1909 = vpop.f32.mrb[0].mxu0
          %v1910 = vadd.f32 %v1801, %v1909
          %v1911 = vpop.f32.mrb[0].mxu0
          %v1912 = vpop.f32.mrb[0].mxu0
          %v1913 = vadd.f32 %v1801, %v1912
          %v1914 = vpop.f32.mrb[0].mxu0
          %1915 = vmatprep.mubr.bf16.mxu0 0
          %1916 = vmatmul.mubr.bf16.gmra.mrb[0].mxu0 %v1772
          %v1917 = vpop.f32.mrb[0].mxu0
          %v1918 = vadd.f32 %v1801, %v1917
          %v1919 = vpop.f32.mrb[0].mxu0
          %v1920 = vpop.f32.mrb[0].mxu0
          %v1921 = vadd.f32 %v1801, %v1920
          %v1922 = vpop.f32.mrb[0].mxu0
          %1923 = vmatprep.mubr.bf16.mxu0 0
          %1924 = vmatmul.mubr.bf16.gmra.mrb[0].mxu0 %v1773
          %v1925 = vpop.f32.mrb[0].mxu0
          %v1926 = vadd.f32 %v1801, %v1925
          %v1927 = vpop.f32.mrb[0].mxu0
          %v1928 = vpop.f32.mrb[0].mxu0
          %v1929 = vadd.f32 %v1801, %v1928
          %v1930 = vpop.f32.mrb[0].mxu0
          %1931 = vmatprep.mubr.bf16.mxu0 0
          %1932 = vmatmul.mubr.bf16.gmra.mrb[0].mxu0 %v1774
          %v1933 = vpop.f32.mrb[0].mxu0
          %v1934 = vadd.f32 %v1801, %v1933
          %v1935 = vpop.f32.mrb[0].mxu0
          %v1936 = vpop.f32.mrb[0].mxu0
          %v1937 = vadd.f32 %v1801, %v1936
          %v1938 = vpop.f32.mrb[0].mxu0
          %1939 = vmatprep.mubr.bf16.mxu0 0
          %1940 = vmatmul.mubr.bf16.gmra.mrb[0].mxu0 %v1775
          %v1941 = vpop.f32.mrb[0].mxu0
          %v1942 = vadd.f32 %v1801, %v1941
          %v1943 = vpop.f32.mrb[0].mxu0
          %v1944 = vpop.f32.mrb[0].mxu0
          %v1945 = vadd.f32 %v1801, %v1944
          %v1946 = vpop.f32.mrb[0].mxu0
          %1947 = vmatprep.mubr.bf16.mxu0 0
          %1948 = vmatmul.mubr.bf16.gmra.mrb[0].mxu0 %v1776
          %v1949 = vpop.f32.mrb[0].mxu0
          %v1950 = vadd.f32 %v1801, %v1949
          %v1951 = vpop.f32.mrb[0].mxu0
          %v1952 = vpop.f32.mrb[0].mxu0
          %v1953 = vadd.f32 %v1801, %v1952
          %v1954 = vpop.f32.mrb[0].mxu0
          %1955 = vmatprep.mubr.bf16.mxu0 0
          %1956 = vmatmul.mubr.bf16.gmra.mrb[0].mxu0 %v1777
          %v1957 = vpop.f32.mrb[0].mxu0
          %v1958 = vadd.f32 %v1801, %v1957
          %v1959 = vpop.f32.mrb[0].mxu0
          %v1960 = vpop.f32.mrb[0].mxu0
          %v1961 = vadd.f32 %v1801, %v1960
          %v1962 = vpop.f32.mrb[0].mxu0
          %1963 = vmatprep.mubr.bf16.mxu0 0
          %1964 = vmatmul.mubr.bf16.gmra.mrb[0].mxu0 %v1778
          %v1965 = vpop.f32.mrb[0].mxu0
          %v1966 = vadd.f32 %v1801, %v1965
          %v1967 = vpop.f32.mrb[0].mxu0
          %v1968 = vpop.f32.mrb[0].mxu0
          %v1969 = vadd.f32 %v1801, %v1968
          %v1970 = vpop.f32.mrb[0].mxu0
          %1971 = vmatprep.mubr.bf16.mxu0 0
          %1972 = vmatmul.mubr.bf16.gmra.mrb[0].mxu0 %v1779
          %v1973 = vpop.f32.mrb[0].mxu0
          %v1974 = vadd.f32 %v1801, %v1973
          %v1975 = vpop.f32.mrb[0].mxu0
          %v1976 = vpop.f32.mrb[0].mxu0
          %v1977 = vadd.f32 %v1801, %v1976
          %v1978 = vpop.f32.mrb[0].mxu0
          %1979 = vdwg.mxu0
          %v1980 = vmax.f32 %v1886, 0.0
          %v1981 = vmax.f32 %v1889, 0.0
          %v1982 = vmax.f32 %v1894, 0.0
          %v1983 = vmax.f32 %v1897, 0.0
          %v1984 = vmax.f32 %v1902, 0.0
          %v1985 = vmax.f32 %v1905, 0.0
          %v1986 = vmax.f32 %v1910, 0.0
          %v1987 = vmax.f32 %v1913, 0.0
          %v1988 = vmax.f32 %v1918, 0.0
          %v1989 = vmax.f32 %v1921, 0.0
          %v1990 = vmax.f32 %v1926, 0.0
          %v1991 = vmax.f32 %v1929, 0.0
          %v1992 = vmax.f32 %v1934, 0.0
          %v1993 = vmax.f32 %v1937, 0.0
          %v1994 = vmax.f32 %v1942, 0.0
          %v1995 = vmax.f32 %v1945, 0.0
          %v1996 = vmax.f32 %v1950, 0.0
          %v1997 = vmax.f32 %v1953, 0.0
          %v1998 = vmax.f32 %v1958, 0.0
          %v1999 = vmax.f32 %v1961, 0.0
          %v2000 = vmax.f32 %v1966, 0.0
          %v2001 = vmax.f32 %v1969, 0.0
          %v2002 = vmax.f32 %v1974, 0.0
          %v2003 = vmax.f32 %v1977, 0.0
          %v2004 = vpack.c.bf16 %v1981, %v1980
          %v2005 = vpack.c.bf16 %v1983, %v1982
          %v2006 = vpack.c.bf16 %v1985, %v1984
          %v2007 = vpack.c.bf16 %v1987, %v1986
          %v2008 = vpack.c.bf16 %v1989, %v1988
          %v2009 = vpack.c.bf16 %v1991, %v1990
          %v2010 = vpack.c.bf16 %v1993, %v1992
          %v2011 = vpack.c.bf16 %v1995, %v1994
          %v2012 = vpack.c.bf16 %v1997, %v1996
          %v2013 = vpack.c.bf16 %v1999, %v1998
          %v2014 = vpack.c.bf16 %v2001, %v2000
          %v2015 = vpack.c.bf16 %v2003, %v2002
          %v2016 = vld [vmem:[#allocation13] sm:$0xf]
          %v2017 = vld [vmem:[#allocation13 + $0x4] sm:$0xf]
          %v2018 = vld [vmem:[#allocation13 + $0x8] sm:$0xf]
          %v2019 = vld [vmem:[#allocation13 + $0xc] sm:$0xf]
          %v2020 = vld [vmem:[#allocation13 + $0x10] sm:$0xf]
          %v2021 = vld [vmem:[#allocation13 + $0x14] sm:$0xf]
          %v2022 = vld [vmem:[#allocation13 + $0x18] sm:$0xf]
          %v2023 = vld [vmem:[#allocation13 + $0x1c] sm:$0xf]
          %v2024 = vld [vmem:[#allocation13 + $0x20] sm:$0xf]
          %v2025 = vld [vmem:[#allocation13 + $0x24] sm:$0xf]
          %v2026 = vld [vmem:[#allocation13 + $0x28] sm:$0xf]
          %v2027 = vld [vmem:[#allocation13 + $0x2c] sm:$0xf]
          %v2028 = vld [vmem:[#allocation13 + $0x30] sm:$0xf]
          %v2029 = vld [vmem:[#allocation13 + $0x34] sm:$0xf]
          %v2030 = vld [vmem:[#allocation13 + $0x38] sm:$0xf]
          %v2031 = vld [vmem:[#allocation13 + $0x3c] sm:$0xf]
          %v2032 = vld [vmem:[%s10] sm:$0x1]
          %v2034 = vlaneseq
          %v2035 = vshrl.u32 %v2034, 7
          %v2036 = vsub.s32 0, %v2035
          %v2037 = vrot.slane %v2032, %v2036
          %v2055 = vunpack.c.l.b16 %v2016
          %v2056 = vunpack.c.l.b16 %v2017
          %v2057 = vunpack.c.l.b16 %v2018
          %v2058 = vunpack.c.l.b16 %v2019
          %v2059 = vunpack.c.l.b16 %v2020
          %v2060 = vunpack.c.l.b16 %v2021
          %v2061 = vunpack.c.l.b16 %v2022
          %v2062 = vunpack.c.l.b16 %v2023
          %v2063 = vunpack.c.l.b16 %v2024
          %v2064 = vunpack.c.l.b16 %v2025
          %v2065 = vunpack.c.l.b16 %v2026
          %v2066 = vunpack.c.l.b16 %v2027
          %v2067 = vunpack.c.l.b16 %v2028
          %v2068 = vunpack.c.l.b16 %v2029
          %v2069 = vunpack.c.l.b16 %v2030
          %v2070 = vunpack.c.l.b16 %v2031
          %v2071 = vpack.c.b16 %v2056, %v2055
          %v2072 = vpack.c.b16 %v2058, %v2057
          %v2073 = vpack.c.b16 %v2060, %v2059
          %v2074 = vpack.c.b16 %v2062, %v2061
          %v2075 = vpack.c.b16 %v2064, %v2063
          %v2076 = vpack.c.b16 %v2066, %v2065
          %v2077 = vpack.c.b16 %v2068, %v2067
          %v2078 = vpack.c.b16 %v2070, %v2069
          %2087 = vmatprep.subr.bf16.mxu0 0
          %2088 = vmatpush1.bf16.msra.mxu0 %v2071
          %2089 = vmatprep.subr.bf16.mxu0 0
          %2090 = vmatpush1.bf16.msra.mxu0 %v2072
          %2091 = vmatprep.subr.bf16.mxu0 0
          %2092 = vmatpush1.bf16.msra.mxu0 %v2073
          %2093 = vmatprep.subr.bf16.mxu0 0
          %2094 = vmatpush1.bf16.msra.mxu0 %v2074
          %2095 = vmatprep.subr.bf16.mxu0 0
          %2096 = vmatpush1.bf16.msra.mxu0 %v2075
          %2097 = vmatprep.subr.bf16.mxu0 0
          %2098 = vmatpush1.bf16.msra.mxu0 %v2076
          %2099 = vmatprep.subr.bf16.mxu0 0
          %2100 = vmatpush1.bf16.msra.mxu0 %v2077
          %2101 = vmatprep.subr.bf16.mxu0 0
          %2102 = vmatpush1.bf16.msra.mxu0 %v2078
          %2103 = vmatprep.subr.bf16.mxu0 0
          %2104 = vmatpush1.bf16.msra.mxu0 0
          %2105 = vmatprep.subr.bf16.mxu0 0
          %2106 = vmatpush1.bf16.msra.mxu0 0
          %2107 = vmatprep.subr.bf16.mxu0 0
          %2108 = vmatpush1.bf16.msra.mxu0 0
          %2109 = vmatprep.subr.bf16.mxu0 0
          %2110 = vmatpush1.bf16.msra.mxu0 0
          %2111 = vmatprep.subr.bf16.mxu0 0
          %2112 = vmatpush1.bf16.msra.mxu0 0
          %2113 = vmatprep.subr.bf16.mxu0 0
          %2114 = vmatpush1.bf16.msra.mxu0 0
          %2115 = vmatprep.subr.bf16.mxu0 0
          %2116 = vmatpush1.bf16.msra.mxu0 0
          %2117 = vmatprep.subr.bf16.mxu0 0
          %2118 = vmatpush1.bf16.msra.mxu0 0
          %2119 = vmatprep.mubr.bf16.mxu0 0
          %2120 = vmatmul.mubr.bf16.gmra.mrb[0].mxu0 %v2004
          %v2121 = vpop.f32.mrb[0].mxu0
          %v2122 = vadd.f32 %v2037, %v2121
          %v2123 = vpop.f32.mrb[0].mxu0
          %v2124 = vpop.f32.mrb[0].mxu0
          %v2125 = vadd.f32 %v2037, %v2124
          %v2126 = vpop.f32.mrb[0].mxu0
          %2127 = vmatprep.mubr.bf16.mxu0 0
          %2128 = vmatmul.mubr.bf16.gmra.mrb[0].mxu0 %v2005
          %v2129 = vpop.f32.mrb[0].mxu0
          %v2130 = vadd.f32 %v2037, %v2129
          %v2131 = vpop.f32.mrb[0].mxu0
          %v2132 = vpop.f32.mrb[0].mxu0
          %v2133 = vadd.f32 %v2037, %v2132
          %v2134 = vpop.f32.mrb[0].mxu0
          %2135 = vmatprep.mubr.bf16.mxu0 0
          %2136 = vmatmul.mubr.bf16.gmra.mrb[0].mxu0 %v2006
          %v2137 = vpop.f32.mrb[0].mxu0
          %v2138 = vadd.f32 %v2037, %v2137
          %v2139 = vpop.f32.mrb[0].mxu0
          %v2140 = vpop.f32.mrb[0].mxu0
          %v2141 = vadd.f32 %v2037, %v2140
          %v2142 = vpop.f32.mrb[0].mxu0
          %2143 = vmatprep.mubr.bf16.mxu0 0
          %2144 = vmatmul.mubr.bf16.gmra.mrb[0].mxu0 %v2007
          %v2145 = vpop.f32.mrb[0].mxu0
          %v2146 = vadd.f32 %v2037, %v2145
          %v2147 = vpop.f32.mrb[0].mxu0
          %v2148 = vpop.f32.mrb[0].mxu0
          %v2149 = vadd.f32 %v2037, %v2148
          %v2150 = vpop.f32.mrb[0].mxu0
          %2151 = vmatprep.mubr.bf16.mxu0 0
          %2152 = vmatmul.mubr.bf16.gmra.mrb[0].mxu0 %v2008
          %v2153 = vpop.f32.mrb[0].mxu0
          %v2154 = vadd.f32 %v2037, %v2153
          %v2155 = vpop.f32.mrb[0].mxu0
          %v2156 = vpop.f32.mrb[0].mxu0
          %v2157 = vadd.f32 %v2037, %v2156
          %v2158 = vpop.f32.mrb[0].mxu0
          %2159 = vmatprep.mubr.bf16.mxu0 0
          %2160 = vmatmul.mubr.bf16.gmra.mrb[0].mxu0 %v2009
          %v2161 = vpop.f32.mrb[0].mxu0
          %v2162 = vadd.f32 %v2037, %v2161
          %v2163 = vpop.f32.mrb[0].mxu0
          %v2164 = vpop.f32.mrb[0].mxu0
          %v2165 = vadd.f32 %v2037, %v2164
          %v2166 = vpop.f32.mrb[0].mxu0
          %2167 = vmatprep.mubr.bf16.mxu0 0
          %2168 = vmatmul.mubr.bf16.gmra.mrb[0].mxu0 %v2010
          %v2169 = vpop.f32.mrb[0].mxu0
          %v2170 = vadd.f32 %v2037, %v2169
          %v2171 = vpop.f32.mrb[0].mxu0
          %v2172 = vpop.f32.mrb[0].mxu0
          %v2173 = vadd.f32 %v2037, %v2172
          %v2174 = vpop.f32.mrb[0].mxu0
          %2175 = vmatprep.mubr.bf16.mxu0 0
          %2176 = vmatmul.mubr.bf16.gmra.mrb[0].mxu0 %v2011
          %v2177 = vpop.f32.mrb[0].mxu0
          %v2178 = vadd.f32 %v2037, %v2177
          %v2179 = vpop.f32.mrb[0].mxu0
          %v2180 = vpop.f32.mrb[0].mxu0
          %v2181 = vadd.f32 %v2037, %v2180
          %v2182 = vpop.f32.mrb[0].mxu0
          %2183 = vmatprep.mubr.bf16.mxu0 0
          %2184 = vmatmul.mubr.bf16.gmra.mrb[0].mxu0 %v2012
          %v2185 = vpop.f32.mrb[0].mxu0
          %v2186 = vadd.f32 %v2037, %v2185
          %v2187 = vpop.f32.mrb[0].mxu0
          %v2188 = vpop.f32.mrb[0].mxu0
          %v2189 = vadd.f32 %v2037, %v2188
          %v2190 = vpop.f32.mrb[0].mxu0
          %2191 = vmatprep.mubr.bf16.mxu0 0
          %2192 = vmatmul.mubr.bf16.gmra.mrb[0].mxu0 %v2013
          %v2193 = vpop.f32.mrb[0].mxu0
          %v2194 = vadd.f32 %v2037, %v2193
          %v2195 = vpop.f32.mrb[0].mxu0
          %v2196 = vpop.f32.mrb[0].mxu0
          %v2197 = vadd.f32 %v2037, %v2196
          %v2198 = vpop.f32.mrb[0].mxu0
          %2199 = vmatprep.mubr.bf16.mxu0 0
          %2200 = vmatmul.mubr.bf16.gmra.mrb[0].mxu0 %v2014
          %v2201 = vpop.f32.mrb[0].mxu0
          %v2202 = vadd.f32 %v2037, %v2201
          %v2203 = vpop.f32.mrb[0].mxu0
          %v2204 = vpop.f32.mrb[0].mxu0
          %v2205 = vadd.f32 %v2037, %v2204
          %v2206 = vpop.f32.mrb[0].mxu0
          %2207 = vmatprep.mubr.bf16.mxu0 0
          %2208 = vmatmul.mubr.bf16.gmra.mrb[0].mxu0 %v2015
          %v2209 = vpop.f32.mrb[0].mxu0
          %v2210 = vadd.f32 %v2037, %v2209
          %v2211 = vpop.f32.mrb[0].mxu0
          %v2212 = vpop.f32.mrb[0].mxu0
          %v2213 = vadd.f32 %v2037, %v2212
          %v2214 = vpop.f32.mrb[0].mxu0
          %2215 = vdwg.mxu0
          %2216 = vmax.xlane.f32.xlu0 %v2122
          %v2217 = vpop.xlane.xlu0 %2216
          %2218 = vmax.xlane.f32.xlu0 %v2125
          %v2219 = vpop.xlane.xlu0 %2218
          %2220 = vmax.xlane.f32.xlu0 %v2130
          %v2221 = vpop.xlane.xlu0 %2220
          %2222 = vmax.xlane.f32.xlu0 %v2133
          %v2223 = vpop.xlane.xlu0 %2222
          %2224 = vmax.xlane.f32.xlu0 %v2138
          %v2225 = vpop.xlane.xlu0 %2224
          %2226 = vmax.xlane.f32.xlu0 %v2141
          %v2227 = vpop.xlane.xlu0 %2226
          %2228 = vmax.xlane.f32.xlu0 %v2146
          %v2229 = vpop.xlane.xlu0 %2228
          %2230 = vmax.xlane.f32.xlu0 %v2149
          %v2231 = vpop.xlane.xlu0 %2230
          %2232 = vmax.xlane.f32.xlu0 %v2154
          %v2233 = vpop.xlane.xlu0 %2232
          %2234 = vmax.xlane.f32.xlu0 %v2157
          %v2235 = vpop.xlane.xlu0 %2234
          %2236 = vmax.xlane.f32.xlu0 %v2162
          %v2237 = vpop.xlane.xlu0 %2236
          %2238 = vmax.xlane.f32.xlu0 %v2165
          %v2239 = vpop.xlane.xlu0 %2238
          %2240 = vmax.xlane.f32.xlu0 %v2170
          %v2241 = vpop.xlane.xlu0 %2240
          %2242 = vmax.xlane.f32.xlu0 %v2173
          %v2243 = vpop.xlane.xlu0 %2242
          %2244 = vmax.xlane.f32.xlu0 %v2178
          %v2245 = vpop.xlane.xlu0 %2244
          %2246 = vmax.xlane.f32.xlu0 %v2181
          %v2247 = vpop.xlane.xlu0 %2246
          %2248 = vmax.xlane.f32.xlu0 %v2186
          %v2249 = vpop.xlane.xlu0 %2248
          %2250 = vmax.xlane.f32.xlu0 %v2189
          %v2251 = vpop.xlane.xlu0 %2250
          %2252 = vmax.xlane.f32.xlu0 %v2194
          %v2253 = vpop.xlane.xlu0 %2252
          %2254 = vmax.xlane.f32.xlu0 %v2197
          %v2255 = vpop.xlane.xlu0 %2254
          %2256 = vmax.xlane.f32.xlu0 %v2202
          %v2257 = vpop.xlane.xlu0 %2256
          %2258 = vmax.xlane.f32.xlu0 %v2205
          %v2259 = vpop.xlane.xlu0 %2258
          %2260 = vmax.xlane.f32.xlu0 %v2210
          %v2261 = vpop.xlane.xlu0 %2260
          %2262 = vmax.xlane.f32.xlu0 %v2213
          %v2263 = vpop.xlane.xlu0 %2262
          %v2264 = vsub.f32 %v2122, %v2217
          %v2265 = vsub.f32 %v2125, %v2219
          %v2266 = vsub.f32 %v2130, %v2221
          %v2267 = vsub.f32 %v2133, %v2223
          %v2268 = vsub.f32 %v2138, %v2225
          %v2269 = vsub.f32 %v2141, %v2227
          %v2270 = vsub.f32 %v2146, %v2229
          %v2271 = vsub.f32 %v2149, %v2231
          %v2272 = vsub.f32 %v2154, %v2233
          %v2273 = vsub.f32 %v2157, %v2235
          %v2274 = vsub.f32 %v2162, %v2237
          %v2275 = vsub.f32 %v2165, %v2239
          %v2276 = vsub.f32 %v2170, %v2241
          %v2277 = vsub.f32 %v2173, %v2243
          %v2278 = vsub.f32 %v2178, %v2245
          %v2279 = vsub.f32 %v2181, %v2247
          %v2280 = vsub.f32 %v2186, %v2249
          %v2281 = vsub.f32 %v2189, %v2251
          %v2282 = vsub.f32 %v2194, %v2253
          %v2283 = vsub.f32 %v2197, %v2255
          %v2284 = vsub.f32 %v2202, %v2257
          %v2285 = vsub.f32 %v2205, %v2259
          %v2286 = vsub.f32 %v2210, %v2261
          %v2287 = vsub.f32 %v2213, %v2263
          %v2288 = vmul.f32 %v2264, 1.442695
          %v2289 = vpow.pop %v2288
          %v2290 = vmul.f32 %v2265, 1.442695
          %v2291 = vpow.pop %v2290
          %v2292 = vmul.f32 %v2266, 1.442695
          %v2293 = vpow.pop %v2292
          %v2294 = vmul.f32 %v2267, 1.442695
          %v2295 = vpow.pop %v2294
          %v2296 = vmul.f32 %v2268, 1.442695
          %v2297 = vpow.pop %v2296
          %v2298 = vmul.f32 %v2269, 1.442695
          %v2299 = vpow.pop %v2298
          %v2300 = vmul.f32 %v2270, 1.442695
          %v2301 = vpow.pop %v2300
          %v2302 = vmul.f32 %v2271, 1.442695
          %v2303 = vpow.pop %v2302
          %v2304 = vmul.f32 %v2272, 1.442695
          %v2305 = vpow.pop %v2304
          %v2306 = vmul.f32 %v2273, 1.442695
          %v2307 = vpow.pop %v2306
          %v2308 = vmul.f32 %v2274, 1.442695
          %v2309 = vpow.pop %v2308
          %v2310 = vmul.f32 %v2275, 1.442695
          %v2311 = vpow.pop %v2310
          %v2312 = vmul.f32 %v2276, 1.442695
          %v2313 = vpow.pop %v2312
          %v2314 = vmul.f32 %v2277, 1.442695
          %v2315 = vpow.pop %v2314
          %v2316 = vmul.f32 %v2278, 1.442695
          %v2317 = vpow.pop %v2316
          %v2318 = vmul.f32 %v2279, 1.442695
          %v2319 = vpow.pop %v2318
          %v2320 = vmul.f32 %v2280, 1.442695
          %v2321 = vpow.pop %v2320
          %v2322 = vmul.f32 %v2281, 1.442695
          %v2323 = vpow.pop %v2322
          %v2324 = vmul.f32 %v2282, 1.442695
          %v2325 = vpow.pop %v2324
          %v2326 = vmul.f32 %v2283, 1.442695
          %v2327 = vpow.pop %v2326
          %v2328 = vmul.f32 %v2284, 1.442695
          %v2329 = vpow.pop %v2328
          %v2330 = vmul.f32 %v2285, 1.442695
          %v2331 = vpow.pop %v2330
          %v2332 = vmul.f32 %v2286, 1.442695
          %v2333 = vpow.pop %v2332
          %v2334 = vmul.f32 %v2287, 1.442695
          %v2335 = vpow.pop %v2334
          %2336 = vadd.xlane.f32.xlu0 %v2289
          %v2337 = vpop.xlane.xlu0 %2336
          %2338 = vadd.xlane.f32.xlu0 %v2291
          %v2339 = vpop.xlane.xlu0 %2338
          %2340 = vadd.xlane.f32.xlu0 %v2293
          %v2341 = vpop.xlane.xlu0 %2340
          %2342 = vadd.xlane.f32.xlu0 %v2295
          %v2343 = vpop.xlane.xlu0 %2342
          %2344 = vadd.xlane.f32.xlu0 %v2297
          %v2345 = vpop.xlane.xlu0 %2344
          %2346 = vadd.xlane.f32.xlu0 %v2299
          %v2347 = vpop.xlane.xlu0 %2346
          %2348 = vadd.xlane.f32.xlu0 %v2301
          %v2349 = vpop.xlane.xlu0 %2348
          %2350 = vadd.xlane.f32.xlu0 %v2303
          %v2351 = vpop.xlane.xlu0 %2350
          %2352 = vadd.xlane.f32.xlu0 %v2305
          %v2353 = vpop.xlane.xlu0 %2352
          %2354 = vadd.xlane.f32.xlu0 %v2307
          %v2355 = vpop.xlane.xlu0 %2354
          %2356 = vadd.xlane.f32.xlu0 %v2309
          %v2357 = vpop.xlane.xlu0 %2356
          %2358 = vadd.xlane.f32.xlu0 %v2311
          %v2359 = vpop.xlane.xlu0 %2358
          %2360 = vadd.xlane.f32.xlu0 %v2313
          %v2361 = vpop.xlane.xlu0 %2360
          %2362 = vadd.xlane.f32.xlu0 %v2315
          %v2363 = vpop.xlane.xlu0 %2362
          %2364 = vadd.xlane.f32.xlu0 %v2317
          %v2365 = vpop.xlane.xlu0 %2364
          %2366 = vadd.xlane.f32.xlu0 %v2319
          %v2367 = vpop.xlane.xlu0 %2366
          %2368 = vadd.xlane.f32.xlu0 %v2321
          %v2369 = vpop.xlane.xlu0 %2368
          %2370 = vadd.xlane.f32.xlu0 %v2323
          %v2371 = vpop.xlane.xlu0 %2370
          %2372 = vadd.xlane.f32.xlu0 %v2325
          %v2373 = vpop.xlane.xlu0 %2372
          %2374 = vadd.xlane.f32.xlu0 %v2327
          %v2375 = vpop.xlane.xlu0 %2374
          %2376 = vadd.xlane.f32.xlu0 %v2329
          %v2377 = vpop.xlane.xlu0 %2376
          %2378 = vadd.xlane.f32.xlu0 %v2331
          %v2379 = vpop.xlane.xlu0 %2378
          %2380 = vadd.xlane.f32.xlu0 %v2333
          %v2381 = vpop.xlane.xlu0 %2380
          %2382 = vadd.xlane.f32.xlu0 %v2335
          %v2383 = vpop.xlane.xlu0 %2382
          %v2384 = vlog2.pop %v2337
          %v2385 = vmul.f32 %v2384, 0.6931472
          %v2386 = vlog2.pop %v2339
          %v2387 = vmul.f32 %v2386, 0.6931472
          %v2388 = vlog2.pop %v2341
          %v2389 = vmul.f32 %v2388, 0.6931472
          %v2390 = vlog2.pop %v2343
          %v2391 = vmul.f32 %v2390, 0.6931472
          %v2392 = vlog2.pop %v2345
          %v2393 = vmul.f32 %v2392, 0.6931472
          %v2394 = vlog2.pop %v2347
          %v2395 = vmul.f32 %v2394, 0.6931472
          %v2396 = vlog2.pop %v2349
          %v2397 = vmul.f32 %v2396, 0.6931472
          %v2398 = vlog2.pop %v2351
          %v2399 = vmul.f32 %v2398, 0.6931472
          %v2400 = vlog2.pop %v2353
          %v2401 = vmul.f32 %v2400, 0.6931472
          %v2402 = vlog2.pop %v2355
          %v2403 = vmul.f32 %v2402, 0.6931472
          %v2404 = vlog2.pop %v2357
          %v2405 = vmul.f32 %v2404, 0.6931472
          %v2406 = vlog2.pop %v2359
          %v2407 = vmul.f32 %v2406, 0.6931472
          %v2408 = vlog2.pop %v2361
          %v2409 = vmul.f32 %v2408, 0.6931472
          %v2410 = vlog2.pop %v2363
          %v2411 = vmul.f32 %v2410, 0.6931472
          %v2412 = vlog2.pop %v2365
          %v2413 = vmul.f32 %v2412, 0.6931472
          %v2414 = vlog2.pop %v2367
          %v2415 = vmul.f32 %v2414, 0.6931472
          %v2416 = vlog2.pop %v2369
          %v2417 = vmul.f32 %v2416, 0.6931472
          %v2418 = vlog2.pop %v2371
          %v2419 = vmul.f32 %v2418, 0.6931472
          %v2420 = vlog2.pop %v2373
          %v2421 = vmul.f32 %v2420, 0.6931472
          %v2422 = vlog2.pop %v2375
          %v2423 = vmul.f32 %v2422, 0.6931472
          %v2424 = vlog2.pop %v2377
          %v2425 = vmul.f32 %v2424, 0.6931472
          %v2426 = vlog2.pop %v2379
          %v2427 = vmul.f32 %v2426, 0.6931472
          %v2428 = vlog2.pop %v2381
          %v2429 = vmul.f32 %v2428, 0.6931472
          %v2430 = vlog2.pop %v2383
          %v2431 = vmul.f32 %v2430, 0.6931472
          %v2432 = vsub.f32 %v2264, %v2385
          %v2433 = vsub.f32 %v2265, %v2387
          %v2434 = vsub.f32 %v2266, %v2389
          %v2435 = vsub.f32 %v2267, %v2391
          %v2436 = vsub.f32 %v2268, %v2393
          %v2437 = vsub.f32 %v2269, %v2395
          %v2438 = vsub.f32 %v2270, %v2397
          %v2439 = vsub.f32 %v2271, %v2399
          %v2440 = vsub.f32 %v2272, %v2401
          %v2441 = vsub.f32 %v2273, %v2403
          %v2442 = vsub.f32 %v2274, %v2405
          %v2443 = vsub.f32 %v2275, %v2407
          %v2444 = vsub.f32 %v2276, %v2409
          %v2445 = vsub.f32 %v2277, %v2411
          %v2446 = vsub.f32 %v2278, %v2413
          %v2447 = vsub.f32 %v2279, %v2415
          %v2448 = vsub.f32 %v2280, %v2417
          %v2449 = vsub.f32 %v2281, %v2419
          %v2450 = vsub.f32 %v2282, %v2421
          %v2451 = vsub.f32 %v2283, %v2423
          %v2452 = vsub.f32 %v2284, %v2425
          %v2453 = vsub.f32 %v2285, %v2427
          %v2454 = vsub.f32 %v2286, %v2429
          %v2455 = vsub.f32 %v2287, %v2431
          %2456 = vst [vmem:[%s11] sm:$0xff] %v2432
          %2457 = vst [vmem:[%s11 + $0x8] sm:$0xff] %v2433
          %2458 = vst [vmem:[%s11 + $0x10] sm:$0xff] %v2434
          %2459 = vst [vmem:[%s11 + $0x18] sm:$0xff] %v2435
          %2460 = vst [vmem:[%s11 + $0x20] sm:$0xff] %v2436
          %2461 = vst [vmem:[%s11 + $0x28] sm:$0xff] %v2437
          %2462 = vst [vmem:[%s11 + $0x30] sm:$0xff] %v2438
          %2463 = vst [vmem:[%s11 + $0x38] sm:$0xff] %v2439
          %2464 = vst [vmem:[%s11 + $0x40] sm:$0xff] %v2440
          %2465 = vst [vmem:[%s11 + $0x48] sm:$0xff] %v2441
          %2466 = vst [vmem:[%s11 + $0x50] sm:$0xff] %v2442
          %2467 = vst [vmem:[%s11 + $0x58] sm:$0xff] %v2443
          %2468 = vst [vmem:[%s11 + $0x60] sm:$0xff] %v2444
          %2469 = vst [vmem:[%s11 + $0x68] sm:$0xff] %v2445
          %2470 = vst [vmem:[%s11 + $0x70] sm:$0xff] %v2446
          %2471 = vst [vmem:[%s11 + $0x78] sm:$0xff] %v2447
          %2472 = vst [vmem:[%s11 + $0x80] sm:$0xff] %v2448
          %2473 = vst [vmem:[%s11 + $0x88] sm:$0xff] %v2449
          %2474 = vst [vmem:[%s11 + $0x90] sm:$0xff] %v2450
          %2475 = vst [vmem:[%s11 + $0x98] sm:$0xff] %v2451
          %2476 = vst [vmem:[%s11 + $0xa0] sm:$0xff] %v2452
          %2477 = vst [vmem:[%s11 + $0xa8] sm:$0xff] %v2453
          %2478 = vst [vmem:[%s11 + $0xb0] sm:$0xff] %v2454
          %2479 = vst [vmem:[%s11 + $0xb8] sm:$0xff] %v2455
        $region100: #{gin_neighsampler_forward.1} parent=63 // pred_fallthru
          _
        // Predicated region
        $region101: #{gin_neighsampler_forward.1} parent=63 // pred_check
          %p2480 = pneg %p300
        $region102: #{gin_neighsampler_forward.1} parent=63 // pred_check_branch
          %2482 = sbr.rel (%p2480) target = $region104
        $region103: #{gin_neighsampler_forward.1} parent=63 // pred_region
          _
        $region104: #{gin_neighsampler_forward.1} parent=63 // pred_fallthru
          _
        // Predicated region
        $region105: #{gin_neighsampler_forward.1} parent=63 // pred_check
          %p2483 = pneg %p300
        $region106: #{gin_neighsampler_forward.1} parent=63 // pred_check_branch
          %2485 = sbr.rel (%p2483) target = $region108
        $region107: #{gin_neighsampler_forward.1} parent=63 // pred_region
          _
        $region108: #{gin_neighsampler_forward.1} parent=63 // pred_fallthru
          _
      $region64: #{gin_neighsampler_forward.1} parent=5 // pred_fallthru
        _
      %p2486 = scmp.le.s32.totalorder 2, %s26
      // Predicated region
      $region109: #{gin_neighsampler_forward.1} parent=5 // pred_check
        %p2487 = pneg %p2486
      $region110: #{gin_neighsampler_forward.1} parent=5 // pred_check_branch
        %2489 = sbr.rel (%p2487) target = $region112
      $region111: #{gin_neighsampler_forward.1} parent=5 // pred_region
        %s2490 = ssub.s32 %s26, 2
      $region112: #{gin_neighsampler_forward.1} parent=5 // pred_fallthru
        _
    $region6: #{gin_neighsampler_forward.1} parent=1 // loop_footer
      %s30 = sadd.s32 1, %s26
    $region7: #{gin_neighsampler_forward.1} parent=1 // loop_footer_branch
      %25 = sbr.rel target = $region3
    $region8: #{gin_neighsampler_forward.1} parent=1 // loop_exit
      _
    %2491 = vsyncpa [#allocation4], 1
    %s2492 = scalar_lea.sflag [#allocation4], 1
    %2493 = vsyncpa %s2492, 1
    %2494 = vsyncpa [#allocation8], 1
    %s2495 = scalar_lea.sflag [#allocation8], 1
    %2496 = vsyncpa %s2495, 1
    %2497 = vsyncpa [#allocation11], 1
    %s2498 = scalar_lea.sflag [#allocation11], 1
    %2499 = vsyncpa %s2498, 1
    %2500 = vsyncpa [#allocation14], 1
    %2501 = vsyncpa [#allocation5], 1
    %s2502 = scalar_lea.sflag [#allocation5], 1
    %2503 = vsyncpa %s2502, 1

</llo_original>
